<compile_context>
chip_gen: v6e
topology: v6e:2x2x1
jax: 0.10.0
libtpu: 0.0.40
codegen_flags: <defaults>
</compile_context>

<pallas_src>
import jax
import jax.numpy as jnp
from jax.experimental import pallas as pl

# ---- model config (small, consistent with the module) ----
B = 2          # batch
S = 8          # sequence length
D = 32         # d_model
H = 4          # num_heads
HD = D // H    # head dim
DFF = 64       # feed-forward hidden
EPS = 1e-5     # PyTorch LayerNorm default eps

# column offsets inside the fused weight slab
_QKV0 = 0                  # wqkv : rows 0:D,   cols 0:3D        (32, 96)
_WO0 = 3 * D               # wo   : rows 0:D,   cols 96:128      (32, 32)
_W10 = 4 * D               # w1   : rows 0:D,   cols 128:192     (32, 64)
_W20 = 4 * D + DFF         # w2   : rows 0:DFF, cols 192:224     (64, 32)
SLAB_ROWS = max(D, DFF)    # 64
SLAB_COLS = _W20 + D       # 224


def encoder_layer_kernel(x_ref, w_ref, vec_ref, out_ref):
    # Whole problem in one invocation: x_ref is (B*S, D) = (16, 32).
    x = x_ref[...].astype(jnp.float32)

    w = w_ref[...]
    wqkv = w[:D, _QKV0:_QKV0 + 3 * D]            # (32, 96)
    wo   = w[:D, _WO0:_WO0 + D]                  # (32, 32)
    w1   = w[:D, _W10:_W10 + DFF]                # (32, 64)
    w2   = w[:DFF, _W20:_W20 + D]                # (64, 32)

    vec = vec_ref[...]
    bqkv = vec[0:1, :3 * D]                      # (1, 96) -> free sublane bcast
    bo   = vec[1:2, :D]
    g1   = vec[2:3, :D]
    be1  = vec[3:4, :D]
    b1   = vec[4:5, :DFF]
    b2   = vec[5:6, :D]
    g2   = vec[6:7, :D]
    be2  = vec[7:8, :D]

    # ---- fused lane-dense QKV projection: one (16,32)x(32,96) MXU push ----
    qkv = jnp.dot(x, wqkv, preferred_element_type=jnp.float32) + bqkv    # (16, 96)
    qkv = qkv.reshape(B, S, 3 * D)

    # ---- batch (b, h) together: B*H = 8 leading-axis groups ----
    def gather_heads(col0):
        parts = [qkv[:, :, col0 + h * HD: col0 + (h + 1) * HD]
                 for h in range(H)]              # each (B, S, HD)
        return jnp.concatenate(parts, axis=0)    # (H*B, S, HD), group = h*B + b

    qg = gather_heads(0)
    kg = gather_heads(D)
    vg = gather_heads(2 * D)

    scale = jnp.float32(1.0) / jnp.sqrt(jnp.float32(HD))
    s = jnp.einsum("gqd,gkd->gqk", qg, kg,
                   preferred_element_type=jnp.float32) * scale           # (8, 8, 8)
    s = s - jnp.max(s, axis=-1, keepdims=True)
    p = jnp.exp(s)
    # exact reciprocal: approx=True risks the 1e-4 correctness tolerance
    p = p * pl.reciprocal(jnp.sum(p, axis=-1, keepdims=True), approx=False)
    og = jnp.einsum("gqk,gkd->gqd", p, vg,
                    preferred_element_type=jnp.float32)                  # (8, 8, 8)

    # re-assemble heads lane-dense: lanes h*HD:(h+1)*HD hold head h
    o = jnp.concatenate([og[h * B:(h + 1) * B] for h in range(H)], axis=-1)
    o = o.reshape(B * S, D)                                              # (16, 32)

    # ---- output projection: single dot ----
    attn = jnp.dot(o, wo, preferred_element_type=jnp.float32) + bo

    # dropout1: identity (inference)
    res1 = x + attn
    mu1 = jnp.mean(res1, axis=-1, keepdims=True)
    var1 = jnp.mean((res1 - mu1) ** 2, axis=-1, keepdims=True)
    out1 = (res1 - mu1) * jax.lax.rsqrt(var1 + EPS) * g1 + be1

    # ---- feed-forward network: Linear -> ReLU -> Linear ----
    h1 = jnp.maximum(jnp.dot(out1, w1, preferred_element_type=jnp.float32) + b1, 0.0)
    ffn = jnp.dot(h1, w2, preferred_element_type=jnp.float32) + b2

    # dropout2: identity (inference)
    res2 = out1 + ffn
    mu2 = jnp.mean(res2, axis=-1, keepdims=True)
    var2 = jnp.mean((res2 - mu2) ** 2, axis=-1, keepdims=True)
    out2 = (res2 - mu2) * jax.lax.rsqrt(var2 + EPS) * g2 + be2

    out_ref[...] = out2.astype(out_ref.dtype)


def pack_params(p):
    """Pack 16 tiny params into 2 lane-dense kernel operands (wrapper-side, free)."""
    assert D <= 128 and DFF <= 128 and 3 * D <= 128, "vec packing assumes widths <= 128"

    slab = jnp.zeros((SLAB_ROWS, SLAB_COLS), jnp.float32)
    wqkv = jnp.concatenate([p["wq"], p["wk"], p["wv"]], axis=1)          # (D, 3D)
    slab = slab.at[:D, _QKV0:_QKV0 + 3 * D].set(wqkv)
    slab = slab.at[:D, _WO0:_WO0 + D].set(p["wo"])
    slab = slab.at[:D, _W10:_W10 + DFF].set(p["w1"])
    slab = slab.at[:DFF, _W20:_W20 + D].set(p["w2"])

    vec = jnp.zeros((8, 128), jnp.float32)
    vec = vec.at[0, :3 * D].set(jnp.concatenate([p["bq"], p["bk"], p["bv"]]))
    vec = vec.at[1, :D].set(p["bo"])
    vec = vec.at[2, :D].set(p["g1"])
    vec = vec.at[3, :D].set(p["be1"])
    vec = vec.at[4, :DFF].set(p["b1"])
    vec = vec.at[5, :D].set(p["b2"])
    vec = vec.at[6, :D].set(p["g2"])
    vec = vec.at[7, :D].set(p["be2"])
    return slab, vec


def encoder_layer(x, params):
    """x: (B, S, D) float32; params: dict of weights (see init_params)."""
    b, s, d = x.shape
    slab, vec = pack_params(params)
    x2 = x.reshape(b * s, d)                 # free metadata reshape in wrapper
    out = pl.pallas_call(
        encoder_layer_kernel,
        out_shape=jax.ShapeDtypeStruct((b * s, d), x.dtype),
    )(x2, slab, vec)
    return out.reshape(b, s, d)


def init_params(key):
    """Deterministic synthetic parameters (shapes follow the PyTorch module)."""
    ks = jax.random.split(key, 8)
    scale = 0.05
    p = {
        # MHA projections, (in, out) layout
        "wq": scale * jax.random.normal(ks[0], (D, D), jnp.float32),
        "bq": jnp.zeros((D,), jnp.float32),
        "wk": scale * jax.random.normal(ks[1], (D, D), jnp.float32),
        "bk": jnp.zeros((D,), jnp.float32),
        "wv": scale * jax.random.normal(ks[2], (D, D), jnp.float32),
        "bv": jnp.zeros((D,), jnp.float32),
        "wo": scale * jax.random.normal(ks[3], (D, D), jnp.float32),
        "bo": 0.01 * jnp.ones((D,), jnp.float32),
        # LayerNorm 1
        "g1": jnp.ones((D,), jnp.float32),
        "be1": jnp.zeros((D,), jnp.float32),
        # FFN
        "w1": scale * jax.random.normal(ks[4], (D, DFF), jnp.float32),
        "b1": 0.01 * jnp.ones((DFF,), jnp.float32),
        "w2": scale * jax.random.normal(ks[5], (DFF, D), jnp.float32),
        "b2": 0.01 * jnp.ones((D,), jnp.float32),
        # LayerNorm 2
        "g2": jnp.ones((D,), jnp.float32),
        "be2": jnp.zeros((D,), jnp.float32),
    }
    return p


def encoder_layer_ref(x, p):
    """Pure-JAX reference for correctness checking (mirrors the PyTorch forward)."""
    def mha(x):
        q = x @ p["wq"] + p["bq"]
        k = x @ p["wk"] + p["bk"]
        v = x @ p["wv"] + p["bv"]

        def split(t):  # (B,S,D) -> (B,H,S,HD)
            return t.reshape(B, S, H, HD).transpose(0, 2, 1, 3)

        qh, kh, vh = split(q), split(k), split(v)
        s = jnp.einsum("bhqd,bhkd->bhqk", qh, kh) / jnp.sqrt(jnp.float32(HD))
        a = jax.nn.softmax(s, axis=-1)
        o = jnp.einsum("bhqk,bhkd->bhqd", a, vh)
        o = o.transpose(0, 2, 1, 3).reshape(B, S, D)
        return o @ p["wo"] + p["bo"]

    def ln(x, g, b):
        mu = jnp.mean(x, axis=-1, keepdims=True)
        var = jnp.mean((x - mu) ** 2, axis=-1, keepdims=True)
        return (x - mu) * jax.lax.rsqrt(var + EPS) * g + b

    attn = mha(x)
    out1 = ln(x + attn, p["g1"], p["be1"])
    ffn = jnp.maximum(out1 @ p["w1"] + p["b1"], 0.0) @ p["w2"] + p["b2"]
    out2 = ln(out1 + ffn, p["g2"], p["be2"])
    return out2


if __name__ == "__main__":
    key = jax.random.PRNGKey(0)
    kx, kp = jax.random.split(key)
    x = jax.random.normal(kx, (B, S, D), jnp.float32)
    params = init_params(kp)

    out = encoder_layer(x, params)
    out = jax.block_until_ready(out)

    ref = jax.block_until_ready(encoder_layer_ref(x, params))
    assert out.shape == (B, S, D)
    assert jnp.allclose(out, ref, rtol=1e-4, atol=1e-4), (
        f"max abs err {jnp.max(jnp.abs(out - ref))}")

    print("KERNEL_OK")
</pallas_src>

<mosaic_0001>
module attributes {stable_mosaic.version = 11 : i64} {
  func.func @encoder_layer_kernel(%arg0: memref<16x32xf32, #tpu.memory_space<vmem>>, %arg1: memref<64x224xf32, #tpu.memory_space<vmem>>, %arg2: memref<8x128xf32, #tpu.memory_space<vmem>>, %arg3: memref<16x32xf32, #tpu.memory_space<vmem>>) attributes {dimension_semantics = [], scalar_prefetch = 0 : i64, scratch_operands = 0 : i64, tpu.core_type = #tpu.core_type<tc>} {
    %c0 = arith.constant 0 : index
    %c0_0 = arith.constant 0 : index
    %0 = vector.load %arg0[%c0, %c0_0] : memref<16x32xf32, #tpu.memory_space<vmem>>, vector<16x32xf32>
    %c0_1 = arith.constant 0 : index
    %c0_2 = arith.constant 0 : index
    %1 = vector.load %arg1[%c0_1, %c0_2] : memref<64x224xf32, #tpu.memory_space<vmem>>, vector<64x224xf32>
    %2 = vector.extract_strided_slice %1 {offsets = [0, 0], sizes = [32, 96], strides = [1, 1]} : vector<64x224xf32> to vector<32x96xf32>
    %3 = vector.extract_strided_slice %1 {offsets = [0, 96], sizes = [32, 32], strides = [1, 1]} : vector<64x224xf32> to vector<32x32xf32>
    %4 = vector.extract_strided_slice %1 {offsets = [0, 128], sizes = [32, 64], strides = [1, 1]} : vector<64x224xf32> to vector<32x64xf32>
    %5 = vector.extract_strided_slice %1 {offsets = [0, 192], sizes = [64, 32], strides = [1, 1]} : vector<64x224xf32> to vector<64x32xf32>
    %c0_3 = arith.constant 0 : index
    %c0_4 = arith.constant 0 : index
    %6 = vector.load %arg2[%c0_3, %c0_4] : memref<8x128xf32, #tpu.memory_space<vmem>>, vector<8x128xf32>
    %7 = vector.extract_strided_slice %6 {offsets = [0, 0], sizes = [1, 96], strides = [1, 1]} : vector<8x128xf32> to vector<1x96xf32>
    %8 = vector.extract_strided_slice %6 {offsets = [1, 0], sizes = [1, 32], strides = [1, 1]} : vector<8x128xf32> to vector<1x32xf32>
    %9 = vector.extract_strided_slice %6 {offsets = [2, 0], sizes = [1, 32], strides = [1, 1]} : vector<8x128xf32> to vector<1x32xf32>
    %10 = vector.extract_strided_slice %6 {offsets = [3, 0], sizes = [1, 32], strides = [1, 1]} : vector<8x128xf32> to vector<1x32xf32>
    %11 = vector.extract_strided_slice %6 {offsets = [4, 0], sizes = [1, 64], strides = [1, 1]} : vector<8x128xf32> to vector<1x64xf32>
    %12 = vector.extract_strided_slice %6 {offsets = [5, 0], sizes = [1, 32], strides = [1, 1]} : vector<8x128xf32> to vector<1x32xf32>
    %13 = vector.extract_strided_slice %6 {offsets = [6, 0], sizes = [1, 32], strides = [1, 1]} : vector<8x128xf32> to vector<1x32xf32>
    %14 = vector.extract_strided_slice %6 {offsets = [7, 0], sizes = [1, 32], strides = [1, 1]} : vector<8x128xf32> to vector<1x32xf32>
    %cst = arith.constant dense<0.000000e+00> : vector<16x96xf32>
    %15 = tpu.matmul %0, %2, %cst {dimension_numbers = #tpu.dot_dimension_numbers<[1], [0], [0], [1], [0, 0, 1, 1], [], []>} : vector<16x32xf32>, vector<32x96xf32>, vector<16x96xf32> -> vector<16x96xf32>
    %16 = vector.broadcast %7 : vector<1x96xf32> to vector<16x96xf32>
    %17 = arith.addf %15, %16 : vector<16x96xf32>
    %18 = vector.shape_cast %17 : vector<16x96xf32> to vector<2x8x96xf32>
    %19 = vector.extract_strided_slice %18 {offsets = [0, 0, 0], sizes = [2, 8, 8], strides = [1, 1, 1]} : vector<2x8x96xf32> to vector<2x8x8xf32>
    %20 = vector.extract_strided_slice %18 {offsets = [0, 0, 8], sizes = [2, 8, 8], strides = [1, 1, 1]} : vector<2x8x96xf32> to vector<2x8x8xf32>
    %21 = vector.extract_strided_slice %18 {offsets = [0, 0, 16], sizes = [2, 8, 8], strides = [1, 1, 1]} : vector<2x8x96xf32> to vector<2x8x8xf32>
    %22 = vector.extract_strided_slice %18 {offsets = [0, 0, 24], sizes = [2, 8, 8], strides = [1, 1, 1]} : vector<2x8x96xf32> to vector<2x8x8xf32>
    %23 = tpu.concatenate %19, %20, %21, %22 in 0 : vector<2x8x8xf32>, vector<2x8x8xf32>, vector<2x8x8xf32>, vector<2x8x8xf32> -> vector<8x8x8xf32>
    %24 = vector.extract_strided_slice %18 {offsets = [0, 0, 32], sizes = [2, 8, 8], strides = [1, 1, 1]} : vector<2x8x96xf32> to vector<2x8x8xf32>
    %25 = vector.extract_strided_slice %18 {offsets = [0, 0, 40], sizes = [2, 8, 8], strides = [1, 1, 1]} : vector<2x8x96xf32> to vector<2x8x8xf32>
    %26 = vector.extract_strided_slice %18 {offsets = [0, 0, 48], sizes = [2, 8, 8], strides = [1, 1, 1]} : vector<2x8x96xf32> to vector<2x8x8xf32>
    %27 = vector.extract_strided_slice %18 {offsets = [0, 0, 56], sizes = [2, 8, 8], strides = [1, 1, 1]} : vector<2x8x96xf32> to vector<2x8x8xf32>
    %28 = tpu.concatenate %24, %25, %26, %27 in 0 : vector<2x8x8xf32>, vector<2x8x8xf32>, vector<2x8x8xf32>, vector<2x8x8xf32> -> vector<8x8x8xf32>
    %29 = vector.extract_strided_slice %18 {offsets = [0, 0, 64], sizes = [2, 8, 8], strides = [1, 1, 1]} : vector<2x8x96xf32> to vector<2x8x8xf32>
    %30 = vector.extract_strided_slice %18 {offsets = [0, 0, 72], sizes = [2, 8, 8], strides = [1, 1, 1]} : vector<2x8x96xf32> to vector<2x8x8xf32>
    %31 = vector.extract_strided_slice %18 {offsets = [0, 0, 80], sizes = [2, 8, 8], strides = [1, 1, 1]} : vector<2x8x96xf32> to vector<2x8x8xf32>
    %32 = vector.extract_strided_slice %18 {offsets = [0, 0, 88], sizes = [2, 8, 8], strides = [1, 1, 1]} : vector<2x8x96xf32> to vector<2x8x8xf32>
    %33 = tpu.concatenate %29, %30, %31, %32 in 0 : vector<2x8x8xf32>, vector<2x8x8xf32>, vector<2x8x8xf32>, vector<2x8x8xf32> -> vector<8x8x8xf32>
    %cst_5 = arith.constant 8.000000e+00 : f32
    %34 = math.sqrt %cst_5 : f32
    %cst_6 = arith.constant 1.000000e+00 : f32
    %35 = arith.divf %cst_6, %34 : f32
    "tpu.trace_start"() <{level = 10 : i32, message = "gqd,gkd->gqk"}> : () -> ()
    %cst_7 = arith.constant dense<0.000000e+00> : vector<8x8x8xf32>
    %36 = tpu.matmul %23, %28, %cst_7 {dimension_numbers = #tpu.dot_dimension_numbers<[2], [2], [1], [1], [0, 0, 0, 1, 1, 1], [0], [0]>} : vector<8x8x8xf32>, vector<8x8x8xf32>, vector<8x8x8xf32> -> vector<8x8x8xf32>
    "tpu.trace_stop"() : () -> ()
    %37 = vector.broadcast %35 : f32 to vector<8x8x8xf32>
    %38 = arith.mulf %36, %37 : vector<8x8x8xf32>
    %cst_8 = arith.constant dense<0xFF800000> : vector<8x8xf32>
    %39 = vector.multi_reduction <maximumf>, %38, %cst_8 [2] : vector<8x8x8xf32> to vector<8x8xf32>
    %40 = vector.shape_cast %39 : vector<8x8xf32> to vector<8x8x1xf32>
    %41 = vector.broadcast %40 : vector<8x8x1xf32> to vector<8x8x8xf32>
    %42 = arith.subf %38, %41 : vector<8x8x8xf32>
    %43 = math.exp %42 : vector<8x8x8xf32>
    %cst_9 = arith.constant dense<0.000000e+00> : vector<8x8xf32>
    %44 = vector.multi_reduction <add>, %43, %cst_9 [2] : vector<8x8x8xf32> to vector<8x8xf32>
    %45 = vector.shape_cast %44 : vector<8x8xf32> to vector<8x8x1xf32>
    %46 = tpu.reciprocal %45 : vector<8x8x1xf32> -> vector<8x8x1xf32>
    %47 = vector.broadcast %46 : vector<8x8x1xf32> to vector<8x8x8xf32>
    %48 = arith.mulf %43, %47 : vector<8x8x8xf32>
    "tpu.trace_start"() <{level = 10 : i32, message = "gqk,gkd->gqd"}> : () -> ()
    %cst_10 = arith.constant dense<0.000000e+00> : vector<8x8x8xf32>
    %49 = tpu.matmul %48, %33, %cst_10 {dimension_numbers = #tpu.dot_dimension_numbers<[2], [1], [1], [2], [0, 0, 0, 1, 1, 2], [0], [0]>} : vector<8x8x8xf32>, vector<8x8x8xf32>, vector<8x8x8xf32> -> vector<8x8x8xf32>
    "tpu.trace_stop"() : () -> ()
    %50 = vector.extract_strided_slice %49 {offsets = [0, 0, 0], sizes = [2, 8, 8], strides = [1, 1, 1]} : vector<8x8x8xf32> to vector<2x8x8xf32>
    %51 = vector.extract_strided_slice %49 {offsets = [2, 0, 0], sizes = [2, 8, 8], strides = [1, 1, 1]} : vector<8x8x8xf32> to vector<2x8x8xf32>
    %52 = vector.extract_strided_slice %49 {offsets = [4, 0, 0], sizes = [2, 8, 8], strides = [1, 1, 1]} : vector<8x8x8xf32> to vector<2x8x8xf32>
    %53 = vector.extract_strided_slice %49 {offsets = [6, 0, 0], sizes = [2, 8, 8], strides = [1, 1, 1]} : vector<8x8x8xf32> to vector<2x8x8xf32>
    %54 = tpu.concatenate %50, %51, %52, %53 in 2 : vector<2x8x8xf32>, vector<2x8x8xf32>, vector<2x8x8xf32>, vector<2x8x8xf32> -> vector<2x8x32xf32>
    %55 = vector.shape_cast %54 : vector<2x8x32xf32> to vector<16x32xf32>
    %cst_11 = arith.constant dense<0.000000e+00> : vector<16x32xf32>
    %56 = tpu.matmul %55, %3, %cst_11 {dimension_numbers = #tpu.dot_dimension_numbers<[1], [0], [0], [1], [0, 0, 1, 1], [], []>} : vector<16x32xf32>, vector<32x32xf32>, vector<16x32xf32> -> vector<16x32xf32>
    %57 = vector.broadcast %8 : vector<1x32xf32> to vector<16x32xf32>
    %58 = arith.addf %56, %57 : vector<16x32xf32>
    %59 = arith.addf %0, %58 : vector<16x32xf32>
    %cst_12 = arith.constant dense<0.000000e+00> : vector<16xf32>
    %60 = vector.multi_reduction <add>, %59, %cst_12 [1] : vector<16x32xf32> to vector<16xf32>
    %61 = vector.shape_cast %60 : vector<16xf32> to vector<16x1xf32>
    %cst_13 = arith.constant 3.200000e+01 : f32
    %62 = vector.broadcast %cst_13 : f32 to vector<16x1xf32>
    %63 = arith.divf %61, %62 : vector<16x1xf32>
    %64 = vector.broadcast %63 : vector<16x1xf32> to vector<16x32xf32>
    %65 = arith.subf %59, %64 : vector<16x32xf32>
    %66 = arith.mulf %65, %65 : vector<16x32xf32>
    %cst_14 = arith.constant dense<0.000000e+00> : vector<16xf32>
    %67 = vector.multi_reduction <add>, %66, %cst_14 [1] : vector<16x32xf32> to vector<16xf32>
    %68 = vector.shape_cast %67 : vector<16xf32> to vector<16x1xf32>
    %cst_15 = arith.constant 3.200000e+01 : f32
    %69 = vector.broadcast %cst_15 : f32 to vector<16x1xf32>
    %70 = arith.divf %68, %69 : vector<16x1xf32>
    %71 = vector.broadcast %63 : vector<16x1xf32> to vector<16x32xf32>
    %72 = arith.subf %59, %71 : vector<16x32xf32>
    %cst_16 = arith.constant 9.99999974E-6 : f32
    %73 = vector.broadcast %cst_16 : f32 to vector<16x1xf32>
    %74 = arith.addf %70, %73 : vector<16x1xf32>
    %75 = math.rsqrt %74 : vector<16x1xf32>
    %76 = vector.broadcast %75 : vector<16x1xf32> to vector<16x32xf32>
    %77 = arith.mulf %72, %76 : vector<16x32xf32>
    %78 = vector.broadcast %9 : vector<1x32xf32> to vector<16x32xf32>
    %79 = arith.mulf %77, %78 : vector<16x32xf32>
    %80 = vector.broadcast %10 : vector<1x32xf32> to vector<16x32xf32>
    %81 = arith.addf %79, %80 : vector<16x32xf32>
    %cst_17 = arith.constant dense<0.000000e+00> : vector<16x64xf32>
    %82 = tpu.matmul %81, %4, %cst_17 {dimension_numbers = #tpu.dot_dimension_numbers<[1], [0], [0], [1], [0, 0, 1, 1], [], []>} : vector<16x32xf32>, vector<32x64xf32>, vector<16x64xf32> -> vector<16x64xf32>
    %83 = vector.broadcast %11 : vector<1x64xf32> to vector<16x64xf32>
    %84 = arith.addf %82, %83 : vector<16x64xf32>
    %cst_18 = arith.constant 0.000000e+00 : f32
    %85 = vector.broadcast %cst_18 : f32 to vector<16x64xf32>
    %86 = arith.maximumf %84, %85 : vector<16x64xf32>
    %cst_19 = arith.constant dense<0.000000e+00> : vector<16x32xf32>
    %87 = tpu.matmul %86, %5, %cst_19 {dimension_numbers = #tpu.dot_dimension_numbers<[1], [0], [0], [1], [0, 0, 1, 1], [], []>} : vector<16x64xf32>, vector<64x32xf32>, vector<16x32xf32> -> vector<16x32xf32>
    %88 = vector.broadcast %12 : vector<1x32xf32> to vector<16x32xf32>
    %89 = arith.addf %87, %88 : vector<16x32xf32>
    %90 = arith.addf %81, %89 : vector<16x32xf32>
    %cst_20 = arith.constant dense<0.000000e+00> : vector<16xf32>
    %91 = vector.multi_reduction <add>, %90, %cst_20 [1] : vector<16x32xf32> to vector<16xf32>
    %92 = vector.shape_cast %91 : vector<16xf32> to vector<16x1xf32>
    %cst_21 = arith.constant 3.200000e+01 : f32
    %93 = vector.broadcast %cst_21 : f32 to vector<16x1xf32>
    %94 = arith.divf %92, %93 : vector<16x1xf32>
    %95 = vector.broadcast %94 : vector<16x1xf32> to vector<16x32xf32>
    %96 = arith.subf %90, %95 : vector<16x32xf32>
    %97 = arith.mulf %96, %96 : vector<16x32xf32>
    %cst_22 = arith.constant dense<0.000000e+00> : vector<16xf32>
    %98 = vector.multi_reduction <add>, %97, %cst_22 [1] : vector<16x32xf32> to vector<16xf32>
    %99 = vector.shape_cast %98 : vector<16xf32> to vector<16x1xf32>
    %cst_23 = arith.constant 3.200000e+01 : f32
    %100 = vector.broadcast %cst_23 : f32 to vector<16x1xf32>
    %101 = arith.divf %99, %100 : vector<16x1xf32>
    %102 = vector.broadcast %94 : vector<16x1xf32> to vector<16x32xf32>
    %103 = arith.subf %90, %102 : vector<16x32xf32>
    %cst_24 = arith.constant 9.99999974E-6 : f32
    %104 = vector.broadcast %cst_24 : f32 to vector<16x1xf32>
    %105 = arith.addf %101, %104 : vector<16x1xf32>
    %106 = math.rsqrt %105 : vector<16x1xf32>
    %107 = vector.broadcast %106 : vector<16x1xf32> to vector<16x32xf32>
    %108 = arith.mulf %103, %107 : vector<16x32xf32>
    %109 = vector.broadcast %13 : vector<1x32xf32> to vector<16x32xf32>
    %110 = arith.mulf %108, %109 : vector<16x32xf32>
    %111 = vector.broadcast %14 : vector<1x32xf32> to vector<16x32xf32>
    %112 = arith.addf %110, %111 : vector<16x32xf32>
    %c0_25 = arith.constant 0 : index
    %c0_26 = arith.constant 0 : index
    %113 = vector.load %arg3[%c0_25, %c0_26] : memref<16x32xf32, #tpu.memory_space<vmem>>, vector<16x32xf32>
    tpu.vector_store %arg3[%c0_25, %c0_26], %112 {strides = array<i32>} : memref<16x32xf32, #tpu.memory_space<vmem>>, vector<16x32xf32>,
    return
  }
}

</mosaic_0001>

<llo_original>
// kernel: tpu_custom_call.1
$region0: #{tpu_custom_call.1}
  #allocation0 [shape = 'u32[]', space=smem, size = 0x4, offset = 0x4, fixed_abs, tag = 'smem constant byte address 0x4 - core index']
  #allocation1 [shape = 'u32[144,128]{1,0:T(1,128)}', space=vmem, size = 0x12000, scoped, tag = 'internal scratch']
  %s0 = inlined_call_operand.hbm [shape: f32[16,32], index: 0, kind: input, shape index: {}]
  %s1 = inlined_call_operand.hbm [shape: f32[64,224], index: 1, kind: input, shape index: {}]
  %s2 = inlined_call_operand.hbm [shape: f32[8,128], index: 2, kind: input, shape index: {}]
  %s3 = inlined_call_operand.hbm [shape: f32[16,32], index: 3, kind: output, shape index: {}]
  %s4 = sld [smem:[#allocation0]]
  $region34: #{tpu_custom_call.1} parent=0
    _
  %s6 = ssub.s32 1, %s4
  %s7 = scalar_select 0, %s6, %s4
  $region1: #{tpu_custom_call.1} parent=0
    #allocation2 [shape = 'u8[8192]{0}', space=vmem, size = 0x2000, scoped, tag = 'input window, operand 0, single buffered']
    #allocation3 [shape = 's32[1]{0}', space=sflag, size = 0x4, scoped, tag = 'scoped memory for tpu_custom_call.1']
    #allocation4 [shape = 's32[1]{0}', space=sflag, size = 0x4, scoped, tag = 'scoped memory for tpu_custom_call.1']
    #allocation5 [shape = 'u8[65536]{0}', space=vmem, size = 0x10000, scoped, tag = 'input window, operand 1, single buffered']
    #allocation6 [shape = 's32[1]{0}', space=sflag, size = 0x4, scoped, tag = 'scoped memory for tpu_custom_call.1']
    #allocation7 [shape = 'u8[4096]{0}', space=vmem, size = 0x1000, scoped, tag = 'input window, operand 2, single buffered']
    #allocation8 [shape = 'u8[8192]{0}', space=vmem, size = 0x2000, scoped, tag = 'output window, operand 0, single buffered']
    %8 = vsyncpa [#allocation3], 0
    %9 = vsyncpa [#allocation6], 0
    %10 = vsyncpa [#allocation4], 0
    // Predicated region
    $region2: #{tpu_custom_call.1} parent=1 // pred_check
      _
    $region3: #{tpu_custom_call.1} parent=1 // pred_check_branch
      %12 = sbr.rel (0) target = $region5
    $region4: #{tpu_custom_call.1} parent=1 // pred_region
      %s14 = ssub.s32 256, 256
      %15 = vsyncadd [#allocation3], %s14
      %s16 = sshll.u32 [#allocation2], 4
      %s17 = int_to_ptr.vmem [resolvable:$true] %s16
      %22 = dma.hbm_to_vmem [thread:$0]  %s0, 256, %s17, [#allocation3], 128, 128, 8
    $region5: #{tpu_custom_call.1} parent=1 // pred_fallthru
      _
    // Predicated region
    $region6: #{tpu_custom_call.1} parent=1 // pred_check
      _
    $region7: #{tpu_custom_call.1} parent=1 // pred_check_branch
      %24 = sbr.rel (0) target = $region9
    $region8: #{tpu_custom_call.1} parent=1 // pred_region
      %s26 = ssub.s32 2048, 2048
      %27 = vsyncadd [#allocation6], %s26
      %s28 = sshll.u32 [#allocation5], 4
      %s29 = int_to_ptr.vmem [resolvable:$true] %s28
      %34 = dma.hbm_to_vmem [thread:$0]  %s1, 2048, %s29, [#allocation6], 256, 256, 16
    $region9: #{tpu_custom_call.1} parent=1 // pred_fallthru
      _
    // Predicated region
    $region10: #{tpu_custom_call.1} parent=1 // pred_check
      _
    $region11: #{tpu_custom_call.1} parent=1 // pred_check_branch
      %36 = sbr.rel (0) target = $region13
    $region12: #{tpu_custom_call.1} parent=1 // pred_region
      %s38 = ssub.s32 128, 128
      %39 = vsyncadd [#allocation6], %s38
      %s41 = sshll.u32 [#allocation7], 4
      %s42 = int_to_ptr.vmem [resolvable:$true] %s41
      %44 = dma.hbm_to_vmem [thread:$0]  %s2, 128, %s42, [#allocation6]
    $region13: #{tpu_custom_call.1} parent=1 // pred_fallthru
      _
    // Predicated region
    $region14: #{tpu_custom_call.1} parent=1 // pred_check
      _
    $region15: #{tpu_custom_call.1} parent=1 // pred_check_branch
      %46 = sbr.rel (0) target = $region17
    $region16: #{tpu_custom_call.1} parent=1 // pred_region
      %47 = dma.done [#allocation3], 256
    $region17: #{tpu_custom_call.1} parent=1 // pred_fallthru
      _
    // Predicated region
    $region18: #{tpu_custom_call.1} parent=1 // pred_check
      _
    $region19: #{tpu_custom_call.1} parent=1 // pred_check_branch
      %49 = sbr.rel (0) target = $region21
    $region20: #{tpu_custom_call.1} parent=1 // pred_region
      %50 = dma.done [#allocation6], 2048
    $region21: #{tpu_custom_call.1} parent=1 // pred_fallthru
      _
    // Predicated region
    $region22: #{tpu_custom_call.1} parent=1 // pred_check
      _
    $region23: #{tpu_custom_call.1} parent=1 // pred_check_branch
      %52 = sbr.rel (0) target = $region25
    $region24: #{tpu_custom_call.1} parent=1 // pred_region
      %53 = dma.done [#allocation6], 128
    $region25: #{tpu_custom_call.1} parent=1 // pred_fallthru
      _
    %v54 = vld [vmem:[#allocation2] sm:$0xff]
    %v55 = vld [vmem:[#allocation2 + $0x8] sm:$0xff]
    %v56 = vld [vmem:[#allocation5] sm:$0xff]
    %v57 = vld [vmem:[#allocation5 + $0x8] sm:$0xff]
    %v58 = vld [vmem:[#allocation5 + $0x10] sm:$0xff]
    %v59 = vld [vmem:[#allocation5 + $0x18] sm:$0xff]
    %v60 = vld [vmem:[#allocation5 + $0x20] sm:$0xff]
    %v61 = vld [vmem:[#allocation5 + $0x28] sm:$0xff]
    %v62 = vld [vmem:[#allocation5 + $0x30] sm:$0xff]
    %v63 = vld [vmem:[#allocation5 + $0x38] sm:$0xff]
    %v64 = vld [vmem:[#allocation5 + $0x48] sm:$0xff]
    %v65 = vld [vmem:[#allocation5 + $0x58] sm:$0xff]
    %v66 = vld [vmem:[#allocation5 + $0x68] sm:$0xff]
    %v67 = vld [vmem:[#allocation5 + $0x78] sm:$0xff]
    %v68 = vld [vmem:[#allocation7] sm:$0xff]
    %v69 = vlaneseq
    %v70 = vshrl.u32 %v69, 7
    %v71 = vsub.s32 0, %v70
    %v72 = vrot.slane %v68, %v71
    %vm73 = vcmask 261120
    %v75 = vsel %vm73, %v54, 0
    %v78 = vsel %vm73, %v55, 0
    %80 = vmatprep.subr.mxu0 0.0
    %81 = vmatpush1.msra.mxu0 0.0
    %82 = vmatprep.subr.mxu0 0.0
    %83 = vmatpush1.msra.mxu0 0.0
    %84 = vmatprep.subr.mxu0 0.0
    %85 = vmatpush1.msra.mxu0 0.0
    %86 = vmatprep.subr.mxu0 0.0
    %87 = vmatpush1.msra.mxu0 0.0
    %88 = vmatprep.subr.mxu0 0.0
    %89 = vmatpush1.msra.mxu0 0.0
    %90 = vmatprep.subr.mxu0 0.0
    %91 = vmatpush1.msra.mxu0 0.0
    %92 = vmatprep.subr.mxu0 0.0
    %93 = vmatpush1.msra.mxu0 0.0
    %94 = vmatprep.subr.mxu0 0.0
    %95 = vmatpush1.msra.mxu0 0.0
    %96 = vmatprep.subr.mxu0 0.0
    %97 = vmatpush1.msra.mxu0 0.0
    %98 = vmatprep.subr.mxu0 0.0
    %99 = vmatpush1.msra.mxu0 0.0
    %100 = vmatprep.subr.mxu0 0.0
    %101 = vmatpush1.msra.mxu0 0.0
    %102 = vmatprep.subr.mxu0 0.0
    %103 = vmatpush1.msra.mxu0 0.0
    %104 = vmatprep.subr.mxu0 0.0
    %105 = vmatpush1.msra.mxu0 %v62
    %106 = vmatprep.subr.mxu0 0.0
    %107 = vmatpush1.msra.mxu0 %v60
    %108 = vmatprep.subr.mxu0 0.0
    %109 = vmatpush1.msra.mxu0 %v58
    %110 = vmatprep.subr.mxu0 0.0
    %111 = vmatpush1.msra.mxu0 %v56
    %112 = vmatprep.subr.mxu0 0.0
    %113 = vmatpush2.msra.mxu0 0.0
    %114 = vmatprep.subr.mxu0 0.0
    %115 = vmatpush2.msra.mxu0 0.0
    %116 = vmatprep.subr.mxu0 0.0
    %117 = vmatpush2.msra.mxu0 0.0
    %118 = vmatprep.subr.mxu0 0.0
    %119 = vmatpush2.msra.mxu0 0.0
    %120 = vmatprep.subr.mxu0 0.0
    %121 = vmatpush2.msra.mxu0 0.0
    %122 = vmatprep.subr.mxu0 0.0
    %123 = vmatpush2.msra.mxu0 0.0
    %124 = vmatprep.subr.mxu0 0.0
    %125 = vmatpush2.msra.mxu0 0.0
    %126 = vmatprep.subr.mxu0 0.0
    %127 = vmatpush2.msra.mxu0 0.0
    %128 = vmatprep.subr.mxu0 0.0
    %129 = vmatpush2.msra.mxu0 0.0
    %130 = vmatprep.subr.mxu0 0.0
    %131 = vmatpush2.msra.mxu0 0.0
    %132 = vmatprep.subr.mxu0 0.0
    %133 = vmatpush2.msra.mxu0 0.0
    %134 = vmatprep.subr.mxu0 0.0
    %135 = vmatpush2.msra.mxu0 0.0
    %136 = vmatprep.subr.mxu0 0.0
    %137 = vmatpush2.msra.mxu0 0.0
    %138 = vmatprep.subr.mxu0 0.0
    %139 = vmatpush2.msra.mxu0 0.0
    %140 = vmatprep.subr.mxu0 0.0
    %141 = vmatpush2.msra.mxu0 0.0
    %142 = vmatprep.subr.mxu0 0.0
    %143 = vmatpush2.msra.mxu0 0.0
    %144 = vmatprep.mubr.f32.mxu0 0.0
    %145 = vmatmul.mubr.f32.gmra.mxu0 %v75
    %v146 = vpop.f32.mrf.mxu0
    %v147 = vadd.f32 %v72, %v146
    %v148 = vpop.f32.mrf.mxu0
    %149 = vmatprep.mubr.f32.mxu0 0.0
    %150 = vmatmul.mubr.f32.gmra.mxu0 %v78
    %v151 = vpop.f32.mrf.mxu0
    %v152 = vadd.f32 %v72, %v151
    %v153 = vpop.f32.mrf.mxu0
    %154 = vdwg.mxu0
    %157 = vrot.lane.b32.xlu0 %v147, 120
    %v158 = vpop.permute.xlu0 %157
    %159 = vrot.lane.b32.xlu0 %v152, 120
    %v160 = vpop.permute.xlu0 %159
    %161 = vrot.lane.b32.xlu0 %v147, 112
    %v162 = vpop.permute.xlu0 %161
    %163 = vrot.lane.b32.xlu0 %v152, 112
    %v164 = vpop.permute.xlu0 %163
    %165 = vrot.lane.b32.xlu0 %v147, 104
    %v166 = vpop.permute.xlu0 %165
    %167 = vrot.lane.b32.xlu0 %v152, 104
    %v168 = vpop.permute.xlu0 %167
    %169 = vrot.lane.b32.xlu0 %v147, 96
    %v170 = vpop.permute.xlu0 %169
    %vm171 = vcmask 64512
    %v172 = vsel %vm171, %v147, 0
    %v174 = vsel %vm171, %v170, 0
    %176 = vmatprep.subr.mxu0 0.0
    %177 = vmatpush1.xpose.msra.mxu0 0.0
    %178 = vmatprep.subr.mxu0 0.0
    %179 = vmatpush1.xpose.msra.mxu0 0.0
    %180 = vmatprep.subr.mxu0 0.0
    %181 = vmatpush1.xpose.msra.mxu0 0.0
    %182 = vmatprep.subr.mxu0 0.0
    %183 = vmatpush1.xpose.msra.mxu0 0.0
    %184 = vmatprep.subr.mxu0 0.0
    %185 = vmatpush1.xpose.msra.mxu0 0.0
    %186 = vmatprep.subr.mxu0 0.0
    %187 = vmatpush1.xpose.msra.mxu0 0.0
    %188 = vmatprep.subr.mxu0 0.0
    %189 = vmatpush1.xpose.msra.mxu0 0.0
    %190 = vmatprep.subr.mxu0 0.0
    %191 = vmatpush1.xpose.msra.mxu0 0.0
    %192 = vmatprep.subr.mxu0 0.0
    %193 = vmatpush1.xpose.msra.mxu0 0.0
    %194 = vmatprep.subr.mxu0 0.0
    %195 = vmatpush1.xpose.msra.mxu0 0.0
    %196 = vmatprep.subr.mxu0 0.0
    %197 = vmatpush1.xpose.msra.mxu0 0.0
    %198 = vmatprep.subr.mxu0 0.0
    %199 = vmatpush1.xpose.msra.mxu0 0.0
    %200 = vmatprep.subr.mxu0 0.0
    %201 = vmatpush1.xpose.msra.mxu0 0.0
    %202 = vmatprep.subr.mxu0 0.0
    %203 = vmatpush1.xpose.msra.mxu0 0.0
    %204 = vmatprep.subr.mxu0 0.0
    %205 = vmatpush1.xpose.msra.mxu0 0.0
    %206 = vmatprep.subr.mxu0 0.0
    %207 = vmatpush1.xpose.msra.mxu0 %v174
    %208 = vmatprep.subr.mxu0 0.0
    %209 = vmatpush2.xpose.msra.mxu0 0.0
    %210 = vmatprep.subr.mxu0 0.0
    %211 = vmatpush2.xpose.msra.mxu0 0.0
    %212 = vmatprep.subr.mxu0 0.0
    %213 = vmatpush2.xpose.msra.mxu0 0.0
    %214 = vmatprep.subr.mxu0 0.0
    %215 = vmatpush2.xpose.msra.mxu0 0.0
    %216 = vmatprep.subr.mxu0 0.0
    %217 = vmatpush2.xpose.msra.mxu0 0.0
    %218 = vmatprep.subr.mxu0 0.0
    %219 = vmatpush2.xpose.msra.mxu0 0.0
    %220 = vmatprep.subr.mxu0 0.0
    %221 = vmatpush2.xpose.msra.mxu0 0.0
    %222 = vmatprep.subr.mxu0 0.0
    %223 = vmatpush2.xpose.msra.mxu0 0.0
    %224 = vmatprep.subr.mxu0 0.0
    %225 = vmatpush2.xpose.msra.mxu0 0.0
    %226 = vmatprep.subr.mxu0 0.0
    %227 = vmatpush2.xpose.msra.mxu0 0.0
    %228 = vmatprep.subr.mxu0 0.0
    %229 = vmatpush2.xpose.msra.mxu0 0.0
    %230 = vmatprep.subr.mxu0 0.0
    %231 = vmatpush2.xpose.msra.mxu0 0.0
    %232 = vmatprep.subr.mxu0 0.0
    %233 = vmatpush2.xpose.msra.mxu0 0.0
    %234 = vmatprep.subr.mxu0 0.0
    %235 = vmatpush2.xpose.msra.mxu0 0.0
    %236 = vmatprep.subr.mxu0 0.0
    %237 = vmatpush2.xpose.msra.mxu0 0.0
    %238 = vmatprep.subr.mxu0 0.0
    %239 = vmatpush2.xpose.msra.mxu0 0.0
    %240 = vmatprep.mubr.f32.mxu0 0.0
    %241 = vmatmul.mubr.f32.gmra.mxu0 %v172
    %v242 = vpop.f32.mrf.mxu0
    %v243 = vadd.f32 0.0, %v242
    %v244 = vpop.f32.mrf.mxu0
    %245 = vdwg.mxu0
    %246 = vrot.lane.b32.xlu0 %v152, 96
    %v247 = vpop.permute.xlu0 %246
    %v248 = vsel %vm171, %v152, 0
    %v250 = vsel %vm171, %v247, 0
    %252 = vmatprep.subr.mxu0 0.0
    %253 = vmatpush1.xpose.msra.mxu0 0.0
    %254 = vmatprep.subr.mxu0 0.0
    %255 = vmatpush1.xpose.msra.mxu0 0.0
    %256 = vmatprep.subr.mxu0 0.0
    %257 = vmatpush1.xpose.msra.mxu0 0.0
    %258 = vmatprep.subr.mxu0 0.0
    %259 = vmatpush1.xpose.msra.mxu0 0.0
    %260 = vmatprep.subr.mxu0 0.0
    %261 = vmatpush1.xpose.msra.mxu0 0.0
    %262 = vmatprep.subr.mxu0 0.0
    %263 = vmatpush1.xpose.msra.mxu0 0.0
    %264 = vmatprep.subr.mxu0 0.0
    %265 = vmatpush1.xpose.msra.mxu0 0.0
    %266 = vmatprep.subr.mxu0 0.0
    %267 = vmatpush1.xpose.msra.mxu0 0.0
    %268 = vmatprep.subr.mxu0 0.0
    %269 = vmatpush1.xpose.msra.mxu0 0.0
    %270 = vmatprep.subr.mxu0 0.0
    %271 = vmatpush1.xpose.msra.mxu0 0.0
    %272 = vmatprep.subr.mxu0 0.0
    %273 = vmatpush1.xpose.msra.mxu0 0.0
    %274 = vmatprep.subr.mxu0 0.0
    %275 = vmatpush1.xpose.msra.mxu0 0.0
    %276 = vmatprep.subr.mxu0 0.0
    %277 = vmatpush1.xpose.msra.mxu0 0.0
    %278 = vmatprep.subr.mxu0 0.0
    %279 = vmatpush1.xpose.msra.mxu0 0.0
    %280 = vmatprep.subr.mxu0 0.0
    %281 = vmatpush1.xpose.msra.mxu0 0.0
    %282 = vmatprep.subr.mxu0 0.0
    %283 = vmatpush1.xpose.msra.mxu0 %v250
    %284 = vmatprep.subr.mxu0 0.0
    %285 = vmatpush2.xpose.msra.mxu0 0.0
    %286 = vmatprep.subr.mxu0 0.0
    %287 = vmatpush2.xpose.msra.mxu0 0.0
    %288 = vmatprep.subr.mxu0 0.0
    %289 = vmatpush2.xpose.msra.mxu0 0.0
    %290 = vmatprep.subr.mxu0 0.0
    %291 = vmatpush2.xpose.msra.mxu0 0.0
    %292 = vmatprep.subr.mxu0 0.0
    %293 = vmatpush2.xpose.msra.mxu0 0.0
    %294 = vmatprep.subr.mxu0 0.0
    %295 = vmatpush2.xpose.msra.mxu0 0.0
    %296 = vmatprep.subr.mxu0 0.0
    %297 = vmatpush2.xpose.msra.mxu0 0.0
    %298 = vmatprep.subr.mxu0 0.0
    %299 = vmatpush2.xpose.msra.mxu0 0.0
    %300 = vmatprep.subr.mxu0 0.0
    %301 = vmatpush2.xpose.msra.mxu0 0.0
    %302 = vmatprep.subr.mxu0 0.0
    %303 = vmatpush2.xpose.msra.mxu0 0.0
    %304 = vmatprep.subr.mxu0 0.0
    %305 = vmatpush2.xpose.msra.mxu0 0.0
    %306 = vmatprep.subr.mxu0 0.0
    %307 = vmatpush2.xpose.msra.mxu0 0.0
    %308 = vmatprep.subr.mxu0 0.0
    %309 = vmatpush2.xpose.msra.mxu0 0.0
    %310 = vmatprep.subr.mxu0 0.0
    %311 = vmatpush2.xpose.msra.mxu0 0.0
    %312 = vmatprep.subr.mxu0 0.0
    %313 = vmatpush2.xpose.msra.mxu0 0.0
    %314 = vmatprep.subr.mxu0 0.0
    %315 = vmatpush2.xpose.msra.mxu0 0.0
    %316 = vmatprep.mubr.f32.mxu0 0.0
    %317 = vmatmul.mubr.f32.gmra.mxu0 %v248
    %v318 = vpop.f32.mrf.mxu0
    %v319 = vadd.f32 0.0, %v318
    %v320 = vpop.f32.mrf.mxu0
    %321 = vdwg.mxu0
    %322 = vrot.lane.b32.xlu0 %v158, 96
    %v323 = vpop.permute.xlu0 %322
    %v324 = vsel %vm171, %v158, 0
    %v326 = vsel %vm171, %v323, 0
    %328 = vmatprep.subr.mxu0 0.0
    %329 = vmatpush1.xpose.msra.mxu0 0.0
    %330 = vmatprep.subr.mxu0 0.0
    %331 = vmatpush1.xpose.msra.mxu0 0.0
    %332 = vmatprep.subr.mxu0 0.0
    %333 = vmatpush1.xpose.msra.mxu0 0.0
    %334 = vmatprep.subr.mxu0 0.0
    %335 = vmatpush1.xpose.msra.mxu0 0.0
    %336 = vmatprep.subr.mxu0 0.0
    %337 = vmatpush1.xpose.msra.mxu0 0.0
    %338 = vmatprep.subr.mxu0 0.0
    %339 = vmatpush1.xpose.msra.mxu0 0.0
    %340 = vmatprep.subr.mxu0 0.0
    %341 = vmatpush1.xpose.msra.mxu0 0.0
    %342 = vmatprep.subr.mxu0 0.0
    %343 = vmatpush1.xpose.msra.mxu0 0.0
    %344 = vmatprep.subr.mxu0 0.0
    %345 = vmatpush1.xpose.msra.mxu0 0.0
    %346 = vmatprep.subr.mxu0 0.0
    %347 = vmatpush1.xpose.msra.mxu0 0.0
    %348 = vmatprep.subr.mxu0 0.0
    %349 = vmatpush1.xpose.msra.mxu0 0.0
    %350 = vmatprep.subr.mxu0 0.0
    %351 = vmatpush1.xpose.msra.mxu0 0.0
    %352 = vmatprep.subr.mxu0 0.0
    %353 = vmatpush1.xpose.msra.mxu0 0.0
    %354 = vmatprep.subr.mxu0 0.0
    %355 = vmatpush1.xpose.msra.mxu0 0.0
    %356 = vmatprep.subr.mxu0 0.0
    %357 = vmatpush1.xpose.msra.mxu0 0.0
    %358 = vmatprep.subr.mxu0 0.0
    %359 = vmatpush1.xpose.msra.mxu0 %v326
    %360 = vmatprep.subr.mxu0 0.0
    %361 = vmatpush2.xpose.msra.mxu0 0.0
    %362 = vmatprep.subr.mxu0 0.0
    %363 = vmatpush2.xpose.msra.mxu0 0.0
    %364 = vmatprep.subr.mxu0 0.0
    %365 = vmatpush2.xpose.msra.mxu0 0.0
    %366 = vmatprep.subr.mxu0 0.0
    %367 = vmatpush2.xpose.msra.mxu0 0.0
    %368 = vmatprep.subr.mxu0 0.0
    %369 = vmatpush2.xpose.msra.mxu0 0.0
    %370 = vmatprep.subr.mxu0 0.0
    %371 = vmatpush2.xpose.msra.mxu0 0.0
    %372 = vmatprep.subr.mxu0 0.0
    %373 = vmatpush2.xpose.msra.mxu0 0.0
    %374 = vmatprep.subr.mxu0 0.0
    %375 = vmatpush2.xpose.msra.mxu0 0.0
    %376 = vmatprep.subr.mxu0 0.0
    %377 = vmatpush2.xpose.msra.mxu0 0.0
    %378 = vmatprep.subr.mxu0 0.0
    %379 = vmatpush2.xpose.msra.mxu0 0.0
    %380 = vmatprep.subr.mxu0 0.0
    %381 = vmatpush2.xpose.msra.mxu0 0.0
    %382 = vmatprep.subr.mxu0 0.0
    %383 = vmatpush2.xpose.msra.mxu0 0.0
    %384 = vmatprep.subr.mxu0 0.0
    %385 = vmatpush2.xpose.msra.mxu0 0.0
    %386 = vmatprep.subr.mxu0 0.0
    %387 = vmatpush2.xpose.msra.mxu0 0.0
    %388 = vmatprep.subr.mxu0 0.0
    %389 = vmatpush2.xpose.msra.mxu0 0.0
    %390 = vmatprep.subr.mxu0 0.0
    %391 = vmatpush2.xpose.msra.mxu0 0.0
    %392 = vmatprep.mubr.f32.mxu0 0.0
    %393 = vmatmul.mubr.f32.gmra.mxu0 %v324
    %v394 = vpop.f32.mrf.mxu0
    %v395 = vadd.f32 0.0, %v394
    %v396 = vpop.f32.mrf.mxu0
    %397 = vdwg.mxu0
    %398 = vrot.lane.b32.xlu0 %v160, 96
    %v399 = vpop.permute.xlu0 %398
    %v400 = vsel %vm171, %v160, 0
    %v402 = vsel %vm171, %v399, 0
    %404 = vmatprep.subr.mxu0 0.0
    %405 = vmatpush1.xpose.msra.mxu0 0.0
    %406 = vmatprep.subr.mxu0 0.0
    %407 = vmatpush1.xpose.msra.mxu0 0.0
    %408 = vmatprep.subr.mxu0 0.0
    %409 = vmatpush1.xpose.msra.mxu0 0.0
    %410 = vmatprep.subr.mxu0 0.0
    %411 = vmatpush1.xpose.msra.mxu0 0.0
    %412 = vmatprep.subr.mxu0 0.0
    %413 = vmatpush1.xpose.msra.mxu0 0.0
    %414 = vmatprep.subr.mxu0 0.0
    %415 = vmatpush1.xpose.msra.mxu0 0.0
    %416 = vmatprep.subr.mxu0 0.0
    %417 = vmatpush1.xpose.msra.mxu0 0.0
    %418 = vmatprep.subr.mxu0 0.0
    %419 = vmatpush1.xpose.msra.mxu0 0.0
    %420 = vmatprep.subr.mxu0 0.0
    %421 = vmatpush1.xpose.msra.mxu0 0.0
    %422 = vmatprep.subr.mxu0 0.0
    %423 = vmatpush1.xpose.msra.mxu0 0.0
    %424 = vmatprep.subr.mxu0 0.0
    %425 = vmatpush1.xpose.msra.mxu0 0.0
    %426 = vmatprep.subr.mxu0 0.0
    %427 = vmatpush1.xpose.msra.mxu0 0.0
    %428 = vmatprep.subr.mxu0 0.0
    %429 = vmatpush1.xpose.msra.mxu0 0.0
    %430 = vmatprep.subr.mxu0 0.0
    %431 = vmatpush1.xpose.msra.mxu0 0.0
    %432 = vmatprep.subr.mxu0 0.0
    %433 = vmatpush1.xpose.msra.mxu0 0.0
    %434 = vmatprep.subr.mxu0 0.0
    %435 = vmatpush1.xpose.msra.mxu0 %v402
    %436 = vmatprep.subr.mxu0 0.0
    %437 = vmatpush2.xpose.msra.mxu0 0.0
    %438 = vmatprep.subr.mxu0 0.0
    %439 = vmatpush2.xpose.msra.mxu0 0.0
    %440 = vmatprep.subr.mxu0 0.0
    %441 = vmatpush2.xpose.msra.mxu0 0.0
    %442 = vmatprep.subr.mxu0 0.0
    %443 = vmatpush2.xpose.msra.mxu0 0.0
    %444 = vmatprep.subr.mxu0 0.0
    %445 = vmatpush2.xpose.msra.mxu0 0.0
    %446 = vmatprep.subr.mxu0 0.0
    %447 = vmatpush2.xpose.msra.mxu0 0.0
    %448 = vmatprep.subr.mxu0 0.0
    %449 = vmatpush2.xpose.msra.mxu0 0.0
    %450 = vmatprep.subr.mxu0 0.0
    %451 = vmatpush2.xpose.msra.mxu0 0.0
    %452 = vmatprep.subr.mxu0 0.0
    %453 = vmatpush2.xpose.msra.mxu0 0.0
    %454 = vmatprep.subr.mxu0 0.0
    %455 = vmatpush2.xpose.msra.mxu0 0.0
    %456 = vmatprep.subr.mxu0 0.0
    %457 = vmatpush2.xpose.msra.mxu0 0.0
    %458 = vmatprep.subr.mxu0 0.0
    %459 = vmatpush2.xpose.msra.mxu0 0.0
    %460 = vmatprep.subr.mxu0 0.0
    %461 = vmatpush2.xpose.msra.mxu0 0.0
    %462 = vmatprep.subr.mxu0 0.0
    %463 = vmatpush2.xpose.msra.mxu0 0.0
    %464 = vmatprep.subr.mxu0 0.0
    %465 = vmatpush2.xpose.msra.mxu0 0.0
    %466 = vmatprep.subr.mxu0 0.0
    %467 = vmatpush2.xpose.msra.mxu0 0.0
    %468 = vmatprep.mubr.f32.mxu0 0.0
    %469 = vmatmul.mubr.f32.gmra.mxu0 %v400
    %v470 = vpop.f32.mrf.mxu0
    %v471 = vadd.f32 0.0, %v470
    %v472 = vpop.f32.mrf.mxu0
    %473 = vdwg.mxu0
    %474 = vrot.lane.b32.xlu0 %v162, 96
    %v475 = vpop.permute.xlu0 %474
    %v476 = vsel %vm171, %v162, 0
    %v478 = vsel %vm171, %v475, 0
    %480 = vmatprep.subr.mxu0 0.0
    %481 = vmatpush1.xpose.msra.mxu0 0.0
    %482 = vmatprep.subr.mxu0 0.0
    %483 = vmatpush1.xpose.msra.mxu0 0.0
    %484 = vmatprep.subr.mxu0 0.0
    %485 = vmatpush1.xpose.msra.mxu0 0.0
    %486 = vmatprep.subr.mxu0 0.0
    %487 = vmatpush1.xpose.msra.mxu0 0.0
    %488 = vmatprep.subr.mxu0 0.0
    %489 = vmatpush1.xpose.msra.mxu0 0.0
    %490 = vmatprep.subr.mxu0 0.0
    %491 = vmatpush1.xpose.msra.mxu0 0.0
    %492 = vmatprep.subr.mxu0 0.0
    %493 = vmatpush1.xpose.msra.mxu0 0.0
    %494 = vmatprep.subr.mxu0 0.0
    %495 = vmatpush1.xpose.msra.mxu0 0.0
    %496 = vmatprep.subr.mxu0 0.0
    %497 = vmatpush1.xpose.msra.mxu0 0.0
    %498 = vmatprep.subr.mxu0 0.0
    %499 = vmatpush1.xpose.msra.mxu0 0.0
    %500 = vmatprep.subr.mxu0 0.0
    %501 = vmatpush1.xpose.msra.mxu0 0.0
    %502 = vmatprep.subr.mxu0 0.0
    %503 = vmatpush1.xpose.msra.mxu0 0.0
    %504 = vmatprep.subr.mxu0 0.0
    %505 = vmatpush1.xpose.msra.mxu0 0.0
    %506 = vmatprep.subr.mxu0 0.0
    %507 = vmatpush1.xpose.msra.mxu0 0.0
    %508 = vmatprep.subr.mxu0 0.0
    %509 = vmatpush1.xpose.msra.mxu0 0.0
    %510 = vmatprep.subr.mxu0 0.0
    %511 = vmatpush1.xpose.msra.mxu0 %v478
    %512 = vmatprep.subr.mxu0 0.0
    %513 = vmatpush2.xpose.msra.mxu0 0.0
    %514 = vmatprep.subr.mxu0 0.0
    %515 = vmatpush2.xpose.msra.mxu0 0.0
    %516 = vmatprep.subr.mxu0 0.0
    %517 = vmatpush2.xpose.msra.mxu0 0.0
    %518 = vmatprep.subr.mxu0 0.0
    %519 = vmatpush2.xpose.msra.mxu0 0.0
    %520 = vmatprep.subr.mxu0 0.0
    %521 = vmatpush2.xpose.msra.mxu0 0.0
    %522 = vmatprep.subr.mxu0 0.0
    %523 = vmatpush2.xpose.msra.mxu0 0.0
    %524 = vmatprep.subr.mxu0 0.0
    %525 = vmatpush2.xpose.msra.mxu0 0.0
    %526 = vmatprep.subr.mxu0 0.0
    %527 = vmatpush2.xpose.msra.mxu0 0.0
    %528 = vmatprep.subr.mxu0 0.0
    %529 = vmatpush2.xpose.msra.mxu0 0.0
    %530 = vmatprep.subr.mxu0 0.0
    %531 = vmatpush2.xpose.msra.mxu0 0.0
    %532 = vmatprep.subr.mxu0 0.0
    %533 = vmatpush2.xpose.msra.mxu0 0.0
    %534 = vmatprep.subr.mxu0 0.0
    %535 = vmatpush2.xpose.msra.mxu0 0.0
    %536 = vmatprep.subr.mxu0 0.0
    %537 = vmatpush2.xpose.msra.mxu0 0.0
    %538 = vmatprep.subr.mxu0 0.0
    %539 = vmatpush2.xpose.msra.mxu0 0.0
    %540 = vmatprep.subr.mxu0 0.0
    %541 = vmatpush2.xpose.msra.mxu0 0.0
    %542 = vmatprep.subr.mxu0 0.0
    %543 = vmatpush2.xpose.msra.mxu0 0.0
    %544 = vmatprep.mubr.f32.mxu0 0.0
    %545 = vmatmul.mubr.f32.gmra.mxu0 %v476
    %v546 = vpop.f32.mrf.mxu0
    %v547 = vadd.f32 0.0, %v546
    %v548 = vpop.f32.mrf.mxu0
    %549 = vdwg.mxu0
    %550 = vrot.lane.b32.xlu0 %v164, 96
    %v551 = vpop.permute.xlu0 %550
    %v552 = vsel %vm171, %v164, 0
    %v554 = vsel %vm171, %v551, 0
    %556 = vmatprep.subr.mxu0 0.0
    %557 = vmatpush1.xpose.msra.mxu0 0.0
    %558 = vmatprep.subr.mxu0 0.0
    %559 = vmatpush1.xpose.msra.mxu0 0.0
    %560 = vmatprep.subr.mxu0 0.0
    %561 = vmatpush1.xpose.msra.mxu0 0.0
    %562 = vmatprep.subr.mxu0 0.0
    %563 = vmatpush1.xpose.msra.mxu0 0.0
    %564 = vmatprep.subr.mxu0 0.0
    %565 = vmatpush1.xpose.msra.mxu0 0.0
    %566 = vmatprep.subr.mxu0 0.0
    %567 = vmatpush1.xpose.msra.mxu0 0.0
    %568 = vmatprep.subr.mxu0 0.0
    %569 = vmatpush1.xpose.msra.mxu0 0.0
    %570 = vmatprep.subr.mxu0 0.0
    %571 = vmatpush1.xpose.msra.mxu0 0.0
    %572 = vmatprep.subr.mxu0 0.0
    %573 = vmatpush1.xpose.msra.mxu0 0.0
    %574 = vmatprep.subr.mxu0 0.0
    %575 = vmatpush1.xpose.msra.mxu0 0.0
    %576 = vmatprep.subr.mxu0 0.0
    %577 = vmatpush1.xpose.msra.mxu0 0.0
    %578 = vmatprep.subr.mxu0 0.0
    %579 = vmatpush1.xpose.msra.mxu0 0.0
    %580 = vmatprep.subr.mxu0 0.0
    %581 = vmatpush1.xpose.msra.mxu0 0.0
    %582 = vmatprep.subr.mxu0 0.0
    %583 = vmatpush1.xpose.msra.mxu0 0.0
    %584 = vmatprep.subr.mxu0 0.0
    %585 = vmatpush1.xpose.msra.mxu0 0.0
    %586 = vmatprep.subr.mxu0 0.0
    %587 = vmatpush1.xpose.msra.mxu0 %v554
    %588 = vmatprep.subr.mxu0 0.0
    %589 = vmatpush2.xpose.msra.mxu0 0.0
    %590 = vmatprep.subr.mxu0 0.0
    %591 = vmatpush2.xpose.msra.mxu0 0.0
    %592 = vmatprep.subr.mxu0 0.0
    %593 = vmatpush2.xpose.msra.mxu0 0.0
    %594 = vmatprep.subr.mxu0 0.0
    %595 = vmatpush2.xpose.msra.mxu0 0.0
    %596 = vmatprep.subr.mxu0 0.0
    %597 = vmatpush2.xpose.msra.mxu0 0.0
    %598 = vmatprep.subr.mxu0 0.0
    %599 = vmatpush2.xpose.msra.mxu0 0.0
    %600 = vmatprep.subr.mxu0 0.0
    %601 = vmatpush2.xpose.msra.mxu0 0.0
    %602 = vmatprep.subr.mxu0 0.0
    %603 = vmatpush2.xpose.msra.mxu0 0.0
    %604 = vmatprep.subr.mxu0 0.0
    %605 = vmatpush2.xpose.msra.mxu0 0.0
    %606 = vmatprep.subr.mxu0 0.0
    %607 = vmatpush2.xpose.msra.mxu0 0.0
    %608 = vmatprep.subr.mxu0 0.0
    %609 = vmatpush2.xpose.msra.mxu0 0.0
    %610 = vmatprep.subr.mxu0 0.0
    %611 = vmatpush2.xpose.msra.mxu0 0.0
    %612 = vmatprep.subr.mxu0 0.0
    %613 = vmatpush2.xpose.msra.mxu0 0.0
    %614 = vmatprep.subr.mxu0 0.0
    %615 = vmatpush2.xpose.msra.mxu0 0.0
    %616 = vmatprep.subr.mxu0 0.0
    %617 = vmatpush2.xpose.msra.mxu0 0.0
    %618 = vmatprep.subr.mxu0 0.0
    %619 = vmatpush2.xpose.msra.mxu0 0.0
    %620 = vmatprep.mubr.f32.mxu0 0.0
    %621 = vmatmul.mubr.f32.gmra.mxu0 %v552
    %v622 = vpop.f32.mrf.mxu0
    %v623 = vadd.f32 0.0, %v622
    %v624 = vpop.f32.mrf.mxu0
    %625 = vdwg.mxu0
    %626 = vrot.lane.b32.xlu0 %v166, 96
    %v627 = vpop.permute.xlu0 %626
    %v628 = vsel %vm171, %v166, 0
    %v630 = vsel %vm171, %v627, 0
    %632 = vmatprep.subr.mxu0 0.0
    %633 = vmatpush1.xpose.msra.mxu0 0.0
    %634 = vmatprep.subr.mxu0 0.0
    %635 = vmatpush1.xpose.msra.mxu0 0.0
    %636 = vmatprep.subr.mxu0 0.0
    %637 = vmatpush1.xpose.msra.mxu0 0.0
    %638 = vmatprep.subr.mxu0 0.0
    %639 = vmatpush1.xpose.msra.mxu0 0.0
    %640 = vmatprep.subr.mxu0 0.0
    %641 = vmatpush1.xpose.msra.mxu0 0.0
    %642 = vmatprep.subr.mxu0 0.0
    %643 = vmatpush1.xpose.msra.mxu0 0.0
    %644 = vmatprep.subr.mxu0 0.0
    %645 = vmatpush1.xpose.msra.mxu0 0.0
    %646 = vmatprep.subr.mxu0 0.0
    %647 = vmatpush1.xpose.msra.mxu0 0.0
    %648 = vmatprep.subr.mxu0 0.0
    %649 = vmatpush1.xpose.msra.mxu0 0.0
    %650 = vmatprep.subr.mxu0 0.0
    %651 = vmatpush1.xpose.msra.mxu0 0.0
    %652 = vmatprep.subr.mxu0 0.0
    %653 = vmatpush1.xpose.msra.mxu0 0.0
    %654 = vmatprep.subr.mxu0 0.0
    %655 = vmatpush1.xpose.msra.mxu0 0.0
    %656 = vmatprep.subr.mxu0 0.0
    %657 = vmatpush1.xpose.msra.mxu0 0.0
    %658 = vmatprep.subr.mxu0 0.0
    %659 = vmatpush1.xpose.msra.mxu0 0.0
    %660 = vmatprep.subr.mxu0 0.0
    %661 = vmatpush1.xpose.msra.mxu0 0.0
    %662 = vmatprep.subr.mxu0 0.0
    %663 = vmatpush1.xpose.msra.mxu0 %v630
    %664 = vmatprep.subr.mxu0 0.0
    %665 = vmatpush2.xpose.msra.mxu0 0.0
    %666 = vmatprep.subr.mxu0 0.0
    %667 = vmatpush2.xpose.msra.mxu0 0.0
    %668 = vmatprep.subr.mxu0 0.0
    %669 = vmatpush2.xpose.msra.mxu0 0.0
    %670 = vmatprep.subr.mxu0 0.0
    %671 = vmatpush2.xpose.msra.mxu0 0.0
    %672 = vmatprep.subr.mxu0 0.0
    %673 = vmatpush2.xpose.msra.mxu0 0.0
    %674 = vmatprep.subr.mxu0 0.0
    %675 = vmatpush2.xpose.msra.mxu0 0.0
    %676 = vmatprep.subr.mxu0 0.0
    %677 = vmatpush2.xpose.msra.mxu0 0.0
    %678 = vmatprep.subr.mxu0 0.0
    %679 = vmatpush2.xpose.msra.mxu0 0.0
    %680 = vmatprep.subr.mxu0 0.0
    %681 = vmatpush2.xpose.msra.mxu0 0.0
    %682 = vmatprep.subr.mxu0 0.0
    %683 = vmatpush2.xpose.msra.mxu0 0.0
    %684 = vmatprep.subr.mxu0 0.0
    %685 = vmatpush2.xpose.msra.mxu0 0.0
    %686 = vmatprep.subr.mxu0 0.0
    %687 = vmatpush2.xpose.msra.mxu0 0.0
    %688 = vmatprep.subr.mxu0 0.0
    %689 = vmatpush2.xpose.msra.mxu0 0.0
    %690 = vmatprep.subr.mxu0 0.0
    %691 = vmatpush2.xpose.msra.mxu0 0.0
    %692 = vmatprep.subr.mxu0 0.0
    %693 = vmatpush2.xpose.msra.mxu0 0.0
    %694 = vmatprep.subr.mxu0 0.0
    %695 = vmatpush2.xpose.msra.mxu0 0.0
    %696 = vmatprep.mubr.f32.mxu0 0.0
    %697 = vmatmul.mubr.f32.gmra.mxu0 %v628
    %v698 = vpop.f32.mrf.mxu0
    %v699 = vadd.f32 0.0, %v698
    %v700 = vpop.f32.mrf.mxu0
    %701 = vdwg.mxu0
    %702 = vrot.lane.b32.xlu0 %v168, 96
    %v703 = vpop.permute.xlu0 %702
    %v704 = vsel %vm171, %v168, 0
    %v706 = vsel %vm171, %v703, 0
    %708 = vmatprep.subr.mxu0 0.0
    %709 = vmatpush1.xpose.msra.mxu0 0.0
    %710 = vmatprep.subr.mxu0 0.0
    %711 = vmatpush1.xpose.msra.mxu0 0.0
    %712 = vmatprep.subr.mxu0 0.0
    %713 = vmatpush1.xpose.msra.mxu0 0.0
    %714 = vmatprep.subr.mxu0 0.0
    %715 = vmatpush1.xpose.msra.mxu0 0.0
    %716 = vmatprep.subr.mxu0 0.0
    %717 = vmatpush1.xpose.msra.mxu0 0.0
    %718 = vmatprep.subr.mxu0 0.0
    %719 = vmatpush1.xpose.msra.mxu0 0.0
    %720 = vmatprep.subr.mxu0 0.0
    %721 = vmatpush1.xpose.msra.mxu0 0.0
    %722 = vmatprep.subr.mxu0 0.0
    %723 = vmatpush1.xpose.msra.mxu0 0.0
    %724 = vmatprep.subr.mxu0 0.0
    %725 = vmatpush1.xpose.msra.mxu0 0.0
    %726 = vmatprep.subr.mxu0 0.0
    %727 = vmatpush1.xpose.msra.mxu0 0.0
    %728 = vmatprep.subr.mxu0 0.0
    %729 = vmatpush1.xpose.msra.mxu0 0.0
    %730 = vmatprep.subr.mxu0 0.0
    %731 = vmatpush1.xpose.msra.mxu0 0.0
    %732 = vmatprep.subr.mxu0 0.0
    %733 = vmatpush1.xpose.msra.mxu0 0.0
    %734 = vmatprep.subr.mxu0 0.0
    %735 = vmatpush1.xpose.msra.mxu0 0.0
    %736 = vmatprep.subr.mxu0 0.0
    %737 = vmatpush1.xpose.msra.mxu0 0.0
    %738 = vmatprep.subr.mxu0 0.0
    %739 = vmatpush1.xpose.msra.mxu0 %v706
    %740 = vmatprep.subr.mxu0 0.0
    %741 = vmatpush2.xpose.msra.mxu0 0.0
    %742 = vmatprep.subr.mxu0 0.0
    %743 = vmatpush2.xpose.msra.mxu0 0.0
    %744 = vmatprep.subr.mxu0 0.0
    %745 = vmatpush2.xpose.msra.mxu0 0.0
    %746 = vmatprep.subr.mxu0 0.0
    %747 = vmatpush2.xpose.msra.mxu0 0.0
    %748 = vmatprep.subr.mxu0 0.0
    %749 = vmatpush2.xpose.msra.mxu0 0.0
    %750 = vmatprep.subr.mxu0 0.0
    %751 = vmatpush2.xpose.msra.mxu0 0.0
    %752 = vmatprep.subr.mxu0 0.0
    %753 = vmatpush2.xpose.msra.mxu0 0.0
    %754 = vmatprep.subr.mxu0 0.0
    %755 = vmatpush2.xpose.msra.mxu0 0.0
    %756 = vmatprep.subr.mxu0 0.0
    %757 = vmatpush2.xpose.msra.mxu0 0.0
    %758 = vmatprep.subr.mxu0 0.0
    %759 = vmatpush2.xpose.msra.mxu0 0.0
    %760 = vmatprep.subr.mxu0 0.0
    %761 = vmatpush2.xpose.msra.mxu0 0.0
    %762 = vmatprep.subr.mxu0 0.0
    %763 = vmatpush2.xpose.msra.mxu0 0.0
    %764 = vmatprep.subr.mxu0 0.0
    %765 = vmatpush2.xpose.msra.mxu0 0.0
    %766 = vmatprep.subr.mxu0 0.0
    %767 = vmatpush2.xpose.msra.mxu0 0.0
    %768 = vmatprep.subr.mxu0 0.0
    %769 = vmatpush2.xpose.msra.mxu0 0.0
    %770 = vmatprep.subr.mxu0 0.0
    %771 = vmatpush2.xpose.msra.mxu0 0.0
    %772 = vmatprep.mubr.f32.mxu0 0.0
    %773 = vmatmul.mubr.f32.gmra.mxu0 %v704
    %v774 = vpop.f32.mrf.mxu0
    %v775 = vadd.f32 0.0, %v774
    %v776 = vpop.f32.mrf.mxu0
    %777 = vdwg.mxu0
    %v778 = vmul.f32 %v243, 0.35355338
    %v779 = vmul.f32 %v319, 0.35355338
    %v780 = vmul.f32 %v395, 0.35355338
    %v781 = vmul.f32 %v471, 0.35355338
    %v782 = vmul.f32 %v547, 0.35355338
    %v783 = vmul.f32 %v623, 0.35355338
    %v784 = vmul.f32 %v699, 0.35355338
    %v785 = vmul.f32 %v775, 0.35355338
    %v786 = vsel %vm171, %v778, -inf
    %787 = vmax.xlane.f32.xlu0 %v786
    %v788 = vpop.xlane.xlu0 %787
    %v789 = vsel %vm171, %v779, -inf
    %790 = vmax.xlane.f32.xlu0 %v789
    %v791 = vpop.xlane.xlu0 %790
    %v792 = vsel %vm171, %v780, -inf
    %793 = vmax.xlane.f32.xlu0 %v792
    %v794 = vpop.xlane.xlu0 %793
    %v795 = vsel %vm171, %v781, -inf
    %796 = vmax.xlane.f32.xlu0 %v795
    %v797 = vpop.xlane.xlu0 %796
    %v798 = vsel %vm171, %v782, -inf
    %799 = vmax.xlane.f32.xlu0 %v798
    %v800 = vpop.xlane.xlu0 %799
    %v801 = vsel %vm171, %v783, -inf
    %802 = vmax.xlane.f32.xlu0 %v801
    %v803 = vpop.xlane.xlu0 %802
    %v804 = vsel %vm171, %v784, -inf
    %805 = vmax.xlane.f32.xlu0 %v804
    %v806 = vpop.xlane.xlu0 %805
    %v807 = vsel %vm171, %v785, -inf
    %808 = vmax.xlane.f32.xlu0 %v807
    %v809 = vpop.xlane.xlu0 %808
    %v810 = vsub.f32 %v778, %v788
    %v811 = vsub.f32 %v779, %v791
    %v812 = vsub.f32 %v780, %v794
    %v813 = vsub.f32 %v781, %v797
    %v814 = vsub.f32 %v782, %v800
    %v815 = vsub.f32 %v783, %v803
    %v816 = vsub.f32 %v784, %v806
    %v817 = vsub.f32 %v785, %v809
    %v818 = vmul.f32 %v810, 1.442695
    %v819 = vpow.pop %v818
    %v820 = vmul.f32 %v811, 1.442695
    %v821 = vpow.pop %v820
    %v822 = vmul.f32 %v812, 1.442695
    %v823 = vpow.pop %v822
    %v824 = vmul.f32 %v813, 1.442695
    %v825 = vpow.pop %v824
    %v826 = vmul.f32 %v814, 1.442695
    %v827 = vpow.pop %v826
    %v828 = vmul.f32 %v815, 1.442695
    %v829 = vpow.pop %v828
    %v830 = vmul.f32 %v816, 1.442695
    %v831 = vpow.pop %v830
    %v832 = vmul.f32 %v817, 1.442695
    %v833 = vpow.pop %v832
    %v834 = vsel %vm171, %v819, 0.0
    %835 = vadd.xlane.f32.xlu0 %v834
    %v836 = vpop.xlane.xlu0 %835
    %v837 = vsel %vm171, %v821, 0.0
    %838 = vadd.xlane.f32.xlu0 %v837
    %v839 = vpop.xlane.xlu0 %838
    %v840 = vsel %vm171, %v823, 0.0
    %841 = vadd.xlane.f32.xlu0 %v840
    %v842 = vpop.xlane.xlu0 %841
    %v843 = vsel %vm171, %v825, 0.0
    %844 = vadd.xlane.f32.xlu0 %v843
    %v845 = vpop.xlane.xlu0 %844
    %v846 = vsel %vm171, %v827, 0.0
    %847 = vadd.xlane.f32.xlu0 %v846
    %v848 = vpop.xlane.xlu0 %847
    %v849 = vsel %vm171, %v829, 0.0
    %850 = vadd.xlane.f32.xlu0 %v849
    %v851 = vpop.xlane.xlu0 %850
    %v852 = vsel %vm171, %v831, 0.0
    %853 = vadd.xlane.f32.xlu0 %v852
    %v854 = vpop.xlane.xlu0 %853
    %v855 = vsel %vm171, %v833, 0.0
    %856 = vadd.xlane.f32.xlu0 %v855
    %v857 = vpop.xlane.xlu0 %856
    %v858 = vrcp.pop %v836
    %v859 = vrcp.pop %v839
    %v860 = vrcp.pop %v842
    %v861 = vrcp.pop %v845
    %v862 = vrcp.pop %v848
    %v863 = vrcp.pop %v851
    %v864 = vrcp.pop %v854
    %v865 = vrcp.pop %v857
    %v866 = vmul.f32 %v819, %v858
    %v867 = vmul.f32 %v821, %v859
    %v868 = vmul.f32 %v823, %v860
    %v869 = vmul.f32 %v825, %v861
    %v870 = vmul.f32 %v827, %v862
    %v871 = vmul.f32 %v829, %v863
    %v872 = vmul.f32 %v831, %v864
    %v873 = vmul.f32 %v833, %v865
    %874 = vrot.lane.b32.xlu0 %v147, 64
    %v875 = vpop.permute.xlu0 %874
    %v878 = vsel %vm171, %v866, 0
    %880 = vmatprep.subr.mxu0 0.0
    %881 = vmatpush1.msra.mxu0 0.0
    %882 = vmatprep.subr.mxu0 0.0
    %883 = vmatpush1.msra.mxu0 0.0
    %884 = vmatprep.subr.mxu0 0.0
    %885 = vmatpush1.msra.mxu0 0.0
    %886 = vmatprep.subr.mxu0 0.0
    %887 = vmatpush1.msra.mxu0 0.0
    %888 = vmatprep.subr.mxu0 0.0
    %889 = vmatpush1.msra.mxu0 0.0
    %890 = vmatprep.subr.mxu0 0.0
    %891 = vmatpush1.msra.mxu0 0.0
    %892 = vmatprep.subr.mxu0 0.0
    %893 = vmatpush1.msra.mxu0 0.0
    %894 = vmatprep.subr.mxu0 0.0
    %895 = vmatpush1.msra.mxu0 0.0
    %896 = vmatprep.subr.mxu0 0.0
    %897 = vmatpush1.msra.mxu0 0.0
    %898 = vmatprep.subr.mxu0 0.0
    %899 = vmatpush1.msra.mxu0 0.0
    %900 = vmatprep.subr.mxu0 0.0
    %901 = vmatpush1.msra.mxu0 0.0
    %902 = vmatprep.subr.mxu0 0.0
    %903 = vmatpush1.msra.mxu0 0.0
    %904 = vmatprep.subr.mxu0 0.0
    %905 = vmatpush1.msra.mxu0 0.0
    %906 = vmatprep.subr.mxu0 0.0
    %907 = vmatpush1.msra.mxu0 0.0
    %908 = vmatprep.subr.mxu0 0.0
    %909 = vmatpush1.msra.mxu0 0.0
    %910 = vmatprep.subr.mxu0 0.0
    %911 = vmatpush1.msra.mxu0 %v875
    %912 = vmatprep.subr.mxu0 0.0
    %913 = vmatpush2.msra.mxu0 0.0
    %914 = vmatprep.subr.mxu0 0.0
    %915 = vmatpush2.msra.mxu0 0.0
    %916 = vmatprep.subr.mxu0 0.0
    %917 = vmatpush2.msra.mxu0 0.0
    %918 = vmatprep.subr.mxu0 0.0
    %919 = vmatpush2.msra.mxu0 0.0
    %920 = vmatprep.subr.mxu0 0.0
    %921 = vmatpush2.msra.mxu0 0.0
    %922 = vmatprep.subr.mxu0 0.0
    %923 = vmatpush2.msra.mxu0 0.0
    %924 = vmatprep.subr.mxu0 0.0
    %925 = vmatpush2.msra.mxu0 0.0
    %926 = vmatprep.subr.mxu0 0.0
    %927 = vmatpush2.msra.mxu0 0.0
    %928 = vmatprep.subr.mxu0 0.0
    %929 = vmatpush2.msra.mxu0 0.0
    %930 = vmatprep.subr.mxu0 0.0
    %931 = vmatpush2.msra.mxu0 0.0
    %932 = vmatprep.subr.mxu0 0.0
    %933 = vmatpush2.msra.mxu0 0.0
    %934 = vmatprep.subr.mxu0 0.0
    %935 = vmatpush2.msra.mxu0 0.0
    %936 = vmatprep.subr.mxu0 0.0
    %937 = vmatpush2.msra.mxu0 0.0
    %938 = vmatprep.subr.mxu0 0.0
    %939 = vmatpush2.msra.mxu0 0.0
    %940 = vmatprep.subr.mxu0 0.0
    %941 = vmatpush2.msra.mxu0 0.0
    %942 = vmatprep.subr.mxu0 0.0
    %943 = vmatpush2.msra.mxu0 0.0
    %944 = vmatprep.mubr.f32.mxu0 0.0
    %945 = vmatmul.mubr.f32.gmra.mxu0 %v878
    %v946 = vpop.f32.mrf.mxu0
    %v947 = vadd.f32 0.0, %v946
    %v948 = vpop.f32.mrf.mxu0
    %949 = vdwg.mxu0
    %950 = vrot.lane.b32.xlu0 %v152, 64
    %v951 = vpop.permute.xlu0 %950
    %v954 = vsel %vm171, %v867, 0
    %956 = vmatprep.subr.mxu0 0.0
    %957 = vmatpush1.msra.mxu0 0.0
    %958 = vmatprep.subr.mxu0 0.0
    %959 = vmatpush1.msra.mxu0 0.0
    %960 = vmatprep.subr.mxu0 0.0
    %961 = vmatpush1.msra.mxu0 0.0
    %962 = vmatprep.subr.mxu0 0.0
    %963 = vmatpush1.msra.mxu0 0.0
    %964 = vmatprep.subr.mxu0 0.0
    %965 = vmatpush1.msra.mxu0 0.0
    %966 = vmatprep.subr.mxu0 0.0
    %967 = vmatpush1.msra.mxu0 0.0
    %968 = vmatprep.subr.mxu0 0.0
    %969 = vmatpush1.msra.mxu0 0.0
    %970 = vmatprep.subr.mxu0 0.0
    %971 = vmatpush1.msra.mxu0 0.0
    %972 = vmatprep.subr.mxu0 0.0
    %973 = vmatpush1.msra.mxu0 0.0
    %974 = vmatprep.subr.mxu0 0.0
    %975 = vmatpush1.msra.mxu0 0.0
    %976 = vmatprep.subr.mxu0 0.0
    %977 = vmatpush1.msra.mxu0 0.0
    %978 = vmatprep.subr.mxu0 0.0
    %979 = vmatpush1.msra.mxu0 0.0
    %980 = vmatprep.subr.mxu0 0.0
    %981 = vmatpush1.msra.mxu0 0.0
    %982 = vmatprep.subr.mxu0 0.0
    %983 = vmatpush1.msra.mxu0 0.0
    %984 = vmatprep.subr.mxu0 0.0
    %985 = vmatpush1.msra.mxu0 0.0
    %986 = vmatprep.subr.mxu0 0.0
    %987 = vmatpush1.msra.mxu0 %v951
    %988 = vmatprep.subr.mxu0 0.0
    %989 = vmatpush2.msra.mxu0 0.0
    %990 = vmatprep.subr.mxu0 0.0
    %991 = vmatpush2.msra.mxu0 0.0
    %992 = vmatprep.subr.mxu0 0.0
    %993 = vmatpush2.msra.mxu0 0.0
    %994 = vmatprep.subr.mxu0 0.0
    %995 = vmatpush2.msra.mxu0 0.0
    %996 = vmatprep.subr.mxu0 0.0
    %997 = vmatpush2.msra.mxu0 0.0
    %998 = vmatprep.subr.mxu0 0.0
    %999 = vmatpush2.msra.mxu0 0.0
    %1000 = vmatprep.subr.mxu0 0.0
    %1001 = vmatpush2.msra.mxu0 0.0
    %1002 = vmatprep.subr.mxu0 0.0
    %1003 = vmatpush2.msra.mxu0 0.0
    %1004 = vmatprep.subr.mxu0 0.0
    %1005 = vmatpush2.msra.mxu0 0.0
    %1006 = vmatprep.subr.mxu0 0.0
    %1007 = vmatpush2.msra.mxu0 0.0
    %1008 = vmatprep.subr.mxu0 0.0
    %1009 = vmatpush2.msra.mxu0 0.0
    %1010 = vmatprep.subr.mxu0 0.0
    %1011 = vmatpush2.msra.mxu0 0.0
    %1012 = vmatprep.subr.mxu0 0.0
    %1013 = vmatpush2.msra.mxu0 0.0
    %1014 = vmatprep.subr.mxu0 0.0
    %1015 = vmatpush2.msra.mxu0 0.0
    %1016 = vmatprep.subr.mxu0 0.0
    %1017 = vmatpush2.msra.mxu0 0.0
    %1018 = vmatprep.subr.mxu0 0.0
    %1019 = vmatpush2.msra.mxu0 0.0
    %1020 = vmatprep.mubr.f32.mxu0 0.0
    %1021 = vmatmul.mubr.f32.gmra.mxu0 %v954
    %v1022 = vpop.f32.mrf.mxu0
    %v1023 = vadd.f32 0.0, %v1022
    %v1024 = vpop.f32.mrf.mxu0
    %1025 = vdwg.mxu0
    %1026 = vrot.lane.b32.xlu0 %v158, 64
    %v1027 = vpop.permute.xlu0 %1026
    %v1030 = vsel %vm171, %v868, 0
    %1032 = vmatprep.subr.mxu0 0.0
    %1033 = vmatpush1.msra.mxu0 0.0
    %1034 = vmatprep.subr.mxu0 0.0
    %1035 = vmatpush1.msra.mxu0 0.0
    %1036 = vmatprep.subr.mxu0 0.0
    %1037 = vmatpush1.msra.mxu0 0.0
    %1038 = vmatprep.subr.mxu0 0.0
    %1039 = vmatpush1.msra.mxu0 0.0
    %1040 = vmatprep.subr.mxu0 0.0
    %1041 = vmatpush1.msra.mxu0 0.0
    %1042 = vmatprep.subr.mxu0 0.0
    %1043 = vmatpush1.msra.mxu0 0.0
    %1044 = vmatprep.subr.mxu0 0.0
    %1045 = vmatpush1.msra.mxu0 0.0
    %1046 = vmatprep.subr.mxu0 0.0
    %1047 = vmatpush1.msra.mxu0 0.0
    %1048 = vmatprep.subr.mxu0 0.0
    %1049 = vmatpush1.msra.mxu0 0.0
    %1050 = vmatprep.subr.mxu0 0.0
    %1051 = vmatpush1.msra.mxu0 0.0
    %1052 = vmatprep.subr.mxu0 0.0
    %1053 = vmatpush1.msra.mxu0 0.0
    %1054 = vmatprep.subr.mxu0 0.0
    %1055 = vmatpush1.msra.mxu0 0.0
    %1056 = vmatprep.subr.mxu0 0.0
    %1057 = vmatpush1.msra.mxu0 0.0
    %1058 = vmatprep.subr.mxu0 0.0
    %1059 = vmatpush1.msra.mxu0 0.0
    %1060 = vmatprep.subr.mxu0 0.0
    %1061 = vmatpush1.msra.mxu0 0.0
    %1062 = vmatprep.subr.mxu0 0.0
    %1063 = vmatpush1.msra.mxu0 %v1027
    %1064 = vmatprep.subr.mxu0 0.0
    %1065 = vmatpush2.msra.mxu0 0.0
    %1066 = vmatprep.subr.mxu0 0.0
    %1067 = vmatpush2.msra.mxu0 0.0
    %1068 = vmatprep.subr.mxu0 0.0
    %1069 = vmatpush2.msra.mxu0 0.0
    %1070 = vmatprep.subr.mxu0 0.0
    %1071 = vmatpush2.msra.mxu0 0.0
    %1072 = vmatprep.subr.mxu0 0.0
    %1073 = vmatpush2.msra.mxu0 0.0
    %1074 = vmatprep.subr.mxu0 0.0
    %1075 = vmatpush2.msra.mxu0 0.0
    %1076 = vmatprep.subr.mxu0 0.0
    %1077 = vmatpush2.msra.mxu0 0.0
    %1078 = vmatprep.subr.mxu0 0.0
    %1079 = vmatpush2.msra.mxu0 0.0
    %1080 = vmatprep.subr.mxu0 0.0
    %1081 = vmatpush2.msra.mxu0 0.0
    %1082 = vmatprep.subr.mxu0 0.0
    %1083 = vmatpush2.msra.mxu0 0.0
    %1084 = vmatprep.subr.mxu0 0.0
    %1085 = vmatpush2.msra.mxu0 0.0
    %1086 = vmatprep.subr.mxu0 0.0
    %1087 = vmatpush2.msra.mxu0 0.0
    %1088 = vmatprep.subr.mxu0 0.0
    %1089 = vmatpush2.msra.mxu0 0.0
    %1090 = vmatprep.subr.mxu0 0.0
    %1091 = vmatpush2.msra.mxu0 0.0
    %1092 = vmatprep.subr.mxu0 0.0
    %1093 = vmatpush2.msra.mxu0 0.0
    %1094 = vmatprep.subr.mxu0 0.0
    %1095 = vmatpush2.msra.mxu0 0.0
    %1096 = vmatprep.mubr.f32.mxu0 0.0
    %1097 = vmatmul.mubr.f32.gmra.mxu0 %v1030
    %v1098 = vpop.f32.mrf.mxu0
    %v1099 = vadd.f32 0.0, %v1098
    %v1100 = vpop.f32.mrf.mxu0
    %1101 = vdwg.mxu0
    %1102 = vrot.lane.b32.xlu0 %v160, 64
    %v1103 = vpop.permute.xlu0 %1102
    %v1106 = vsel %vm171, %v869, 0
    %1108 = vmatprep.subr.mxu0 0.0
    %1109 = vmatpush1.msra.mxu0 0.0
    %1110 = vmatprep.subr.mxu0 0.0
    %1111 = vmatpush1.msra.mxu0 0.0
    %1112 = vmatprep.subr.mxu0 0.0
    %1113 = vmatpush1.msra.mxu0 0.0
    %1114 = vmatprep.subr.mxu0 0.0
    %1115 = vmatpush1.msra.mxu0 0.0
    %1116 = vmatprep.subr.mxu0 0.0
    %1117 = vmatpush1.msra.mxu0 0.0
    %1118 = vmatprep.subr.mxu0 0.0
    %1119 = vmatpush1.msra.mxu0 0.0
    %1120 = vmatprep.subr.mxu0 0.0
    %1121 = vmatpush1.msra.mxu0 0.0
    %1122 = vmatprep.subr.mxu0 0.0
    %1123 = vmatpush1.msra.mxu0 0.0
    %1124 = vmatprep.subr.mxu0 0.0
    %1125 = vmatpush1.msra.mxu0 0.0
    %1126 = vmatprep.subr.mxu0 0.0
    %1127 = vmatpush1.msra.mxu0 0.0
    %1128 = vmatprep.subr.mxu0 0.0
    %1129 = vmatpush1.msra.mxu0 0.0
    %1130 = vmatprep.subr.mxu0 0.0
    %1131 = vmatpush1.msra.mxu0 0.0
    %1132 = vmatprep.subr.mxu0 0.0
    %1133 = vmatpush1.msra.mxu0 0.0
    %1134 = vmatprep.subr.mxu0 0.0
    %1135 = vmatpush1.msra.mxu0 0.0
    %1136 = vmatprep.subr.mxu0 0.0
    %1137 = vmatpush1.msra.mxu0 0.0
    %1138 = vmatprep.subr.mxu0 0.0
    %1139 = vmatpush1.msra.mxu0 %v1103
    %1140 = vmatprep.subr.mxu0 0.0
    %1141 = vmatpush2.msra.mxu0 0.0
    %1142 = vmatprep.subr.mxu0 0.0
    %1143 = vmatpush2.msra.mxu0 0.0
    %1144 = vmatprep.subr.mxu0 0.0
    %1145 = vmatpush2.msra.mxu0 0.0
    %1146 = vmatprep.subr.mxu0 0.0
    %1147 = vmatpush2.msra.mxu0 0.0
    %1148 = vmatprep.subr.mxu0 0.0
    %1149 = vmatpush2.msra.mxu0 0.0
    %1150 = vmatprep.subr.mxu0 0.0
    %1151 = vmatpush2.msra.mxu0 0.0
    %1152 = vmatprep.subr.mxu0 0.0
    %1153 = vmatpush2.msra.mxu0 0.0
    %1154 = vmatprep.subr.mxu0 0.0
    %1155 = vmatpush2.msra.mxu0 0.0
    %1156 = vmatprep.subr.mxu0 0.0
    %1157 = vmatpush2.msra.mxu0 0.0
    %1158 = vmatprep.subr.mxu0 0.0
    %1159 = vmatpush2.msra.mxu0 0.0
    %1160 = vmatprep.subr.mxu0 0.0
    %1161 = vmatpush2.msra.mxu0 0.0
    %1162 = vmatprep.subr.mxu0 0.0
    %1163 = vmatpush2.msra.mxu0 0.0
    %1164 = vmatprep.subr.mxu0 0.0
    %1165 = vmatpush2.msra.mxu0 0.0
    %1166 = vmatprep.subr.mxu0 0.0
    %1167 = vmatpush2.msra.mxu0 0.0
    %1168 = vmatprep.subr.mxu0 0.0
    %1169 = vmatpush2.msra.mxu0 0.0
    %1170 = vmatprep.subr.mxu0 0.0
    %1171 = vmatpush2.msra.mxu0 0.0
    %1172 = vmatprep.mubr.f32.mxu0 0.0
    %1173 = vmatmul.mubr.f32.gmra.mxu0 %v1106
    %v1174 = vpop.f32.mrf.mxu0
    %v1175 = vadd.f32 0.0, %v1174
    %v1176 = vpop.f32.mrf.mxu0
    %1177 = vdwg.mxu0
    %1178 = vrot.lane.b32.xlu0 %v162, 64
    %v1179 = vpop.permute.xlu0 %1178
    %v1182 = vsel %vm171, %v870, 0
    %1184 = vmatprep.subr.mxu0 0.0
    %1185 = vmatpush1.msra.mxu0 0.0
    %1186 = vmatprep.subr.mxu0 0.0
    %1187 = vmatpush1.msra.mxu0 0.0
    %1188 = vmatprep.subr.mxu0 0.0
    %1189 = vmatpush1.msra.mxu0 0.0
    %1190 = vmatprep.subr.mxu0 0.0
    %1191 = vmatpush1.msra.mxu0 0.0
    %1192 = vmatprep.subr.mxu0 0.0
    %1193 = vmatpush1.msra.mxu0 0.0
    %1194 = vmatprep.subr.mxu0 0.0
    %1195 = vmatpush1.msra.mxu0 0.0
    %1196 = vmatprep.subr.mxu0 0.0
    %1197 = vmatpush1.msra.mxu0 0.0
    %1198 = vmatprep.subr.mxu0 0.0
    %1199 = vmatpush1.msra.mxu0 0.0
    %1200 = vmatprep.subr.mxu0 0.0
    %1201 = vmatpush1.msra.mxu0 0.0
    %1202 = vmatprep.subr.mxu0 0.0
    %1203 = vmatpush1.msra.mxu0 0.0
    %1204 = vmatprep.subr.mxu0 0.0
    %1205 = vmatpush1.msra.mxu0 0.0
    %1206 = vmatprep.subr.mxu0 0.0
    %1207 = vmatpush1.msra.mxu0 0.0
    %1208 = vmatprep.subr.mxu0 0.0
    %1209 = vmatpush1.msra.mxu0 0.0
    %1210 = vmatprep.subr.mxu0 0.0
    %1211 = vmatpush1.msra.mxu0 0.0
    %1212 = vmatprep.subr.mxu0 0.0
    %1213 = vmatpush1.msra.mxu0 0.0
    %1214 = vmatprep.subr.mxu0 0.0
    %1215 = vmatpush1.msra.mxu0 %v1179
    %1216 = vmatprep.subr.mxu0 0.0
    %1217 = vmatpush2.msra.mxu0 0.0
    %1218 = vmatprep.subr.mxu0 0.0
    %1219 = vmatpush2.msra.mxu0 0.0
    %1220 = vmatprep.subr.mxu0 0.0
    %1221 = vmatpush2.msra.mxu0 0.0
    %1222 = vmatprep.subr.mxu0 0.0
    %1223 = vmatpush2.msra.mxu0 0.0
    %1224 = vmatprep.subr.mxu0 0.0
    %1225 = vmatpush2.msra.mxu0 0.0
    %1226 = vmatprep.subr.mxu0 0.0
    %1227 = vmatpush2.msra.mxu0 0.0
    %1228 = vmatprep.subr.mxu0 0.0
    %1229 = vmatpush2.msra.mxu0 0.0
    %1230 = vmatprep.subr.mxu0 0.0
    %1231 = vmatpush2.msra.mxu0 0.0
    %1232 = vmatprep.subr.mxu0 0.0
    %1233 = vmatpush2.msra.mxu0 0.0
    %1234 = vmatprep.subr.mxu0 0.0
    %1235 = vmatpush2.msra.mxu0 0.0
    %1236 = vmatprep.subr.mxu0 0.0
    %1237 = vmatpush2.msra.mxu0 0.0
    %1238 = vmatprep.subr.mxu0 0.0
    %1239 = vmatpush2.msra.mxu0 0.0
    %1240 = vmatprep.subr.mxu0 0.0
    %1241 = vmatpush2.msra.mxu0 0.0
    %1242 = vmatprep.subr.mxu0 0.0
    %1243 = vmatpush2.msra.mxu0 0.0
    %1244 = vmatprep.subr.mxu0 0.0
    %1245 = vmatpush2.msra.mxu0 0.0
    %1246 = vmatprep.subr.mxu0 0.0
    %1247 = vmatpush2.msra.mxu0 0.0
    %1248 = vmatprep.mubr.f32.mxu0 0.0
    %1249 = vmatmul.mubr.f32.gmra.mxu0 %v1182
    %v1250 = vpop.f32.mrf.mxu0
    %v1251 = vadd.f32 0.0, %v1250
    %v1252 = vpop.f32.mrf.mxu0
    %1253 = vdwg.mxu0
    %1254 = vrot.lane.b32.xlu0 %v164, 64
    %v1255 = vpop.permute.xlu0 %1254
    %v1258 = vsel %vm171, %v871, 0
    %1260 = vmatprep.subr.mxu0 0.0
    %1261 = vmatpush1.msra.mxu0 0.0
    %1262 = vmatprep.subr.mxu0 0.0
    %1263 = vmatpush1.msra.mxu0 0.0
    %1264 = vmatprep.subr.mxu0 0.0
    %1265 = vmatpush1.msra.mxu0 0.0
    %1266 = vmatprep.subr.mxu0 0.0
    %1267 = vmatpush1.msra.mxu0 0.0
    %1268 = vmatprep.subr.mxu0 0.0
    %1269 = vmatpush1.msra.mxu0 0.0
    %1270 = vmatprep.subr.mxu0 0.0
    %1271 = vmatpush1.msra.mxu0 0.0
    %1272 = vmatprep.subr.mxu0 0.0
    %1273 = vmatpush1.msra.mxu0 0.0
    %1274 = vmatprep.subr.mxu0 0.0
    %1275 = vmatpush1.msra.mxu0 0.0
    %1276 = vmatprep.subr.mxu0 0.0
    %1277 = vmatpush1.msra.mxu0 0.0
    %1278 = vmatprep.subr.mxu0 0.0
    %1279 = vmatpush1.msra.mxu0 0.0
    %1280 = vmatprep.subr.mxu0 0.0
    %1281 = vmatpush1.msra.mxu0 0.0
    %1282 = vmatprep.subr.mxu0 0.0
    %1283 = vmatpush1.msra.mxu0 0.0
    %1284 = vmatprep.subr.mxu0 0.0
    %1285 = vmatpush1.msra.mxu0 0.0
    %1286 = vmatprep.subr.mxu0 0.0
    %1287 = vmatpush1.msra.mxu0 0.0
    %1288 = vmatprep.subr.mxu0 0.0
    %1289 = vmatpush1.msra.mxu0 0.0
    %1290 = vmatprep.subr.mxu0 0.0
    %1291 = vmatpush1.msra.mxu0 %v1255
    %1292 = vmatprep.subr.mxu0 0.0
    %1293 = vmatpush2.msra.mxu0 0.0
    %1294 = vmatprep.subr.mxu0 0.0
    %1295 = vmatpush2.msra.mxu0 0.0
    %1296 = vmatprep.subr.mxu0 0.0
    %1297 = vmatpush2.msra.mxu0 0.0
    %1298 = vmatprep.subr.mxu0 0.0
    %1299 = vmatpush2.msra.mxu0 0.0
    %1300 = vmatprep.subr.mxu0 0.0
    %1301 = vmatpush2.msra.mxu0 0.0
    %1302 = vmatprep.subr.mxu0 0.0
    %1303 = vmatpush2.msra.mxu0 0.0
    %1304 = vmatprep.subr.mxu0 0.0
    %1305 = vmatpush2.msra.mxu0 0.0
    %1306 = vmatprep.subr.mxu0 0.0
    %1307 = vmatpush2.msra.mxu0 0.0
    %1308 = vmatprep.subr.mxu0 0.0
    %1309 = vmatpush2.msra.mxu0 0.0
    %1310 = vmatprep.subr.mxu0 0.0
    %1311 = vmatpush2.msra.mxu0 0.0
    %1312 = vmatprep.subr.mxu0 0.0
    %1313 = vmatpush2.msra.mxu0 0.0
    %1314 = vmatprep.subr.mxu0 0.0
    %1315 = vmatpush2.msra.mxu0 0.0
    %1316 = vmatprep.subr.mxu0 0.0
    %1317 = vmatpush2.msra.mxu0 0.0
    %1318 = vmatprep.subr.mxu0 0.0
    %1319 = vmatpush2.msra.mxu0 0.0
    %1320 = vmatprep.subr.mxu0 0.0
    %1321 = vmatpush2.msra.mxu0 0.0
    %1322 = vmatprep.subr.mxu0 0.0
    %1323 = vmatpush2.msra.mxu0 0.0
    %1324 = vmatprep.mubr.f32.mxu0 0.0
    %1325 = vmatmul.mubr.f32.gmra.mxu0 %v1258
    %v1326 = vpop.f32.mrf.mxu0
    %v1327 = vadd.f32 0.0, %v1326
    %v1328 = vpop.f32.mrf.mxu0
    %1329 = vdwg.mxu0
    %1330 = vrot.lane.b32.xlu0 %v166, 64
    %v1331 = vpop.permute.xlu0 %1330
    %v1334 = vsel %vm171, %v872, 0
    %1336 = vmatprep.subr.mxu0 0.0
    %1337 = vmatpush1.msra.mxu0 0.0
    %1338 = vmatprep.subr.mxu0 0.0
    %1339 = vmatpush1.msra.mxu0 0.0
    %1340 = vmatprep.subr.mxu0 0.0
    %1341 = vmatpush1.msra.mxu0 0.0
    %1342 = vmatprep.subr.mxu0 0.0
    %1343 = vmatpush1.msra.mxu0 0.0
    %1344 = vmatprep.subr.mxu0 0.0
    %1345 = vmatpush1.msra.mxu0 0.0
    %1346 = vmatprep.subr.mxu0 0.0
    %1347 = vmatpush1.msra.mxu0 0.0
    %1348 = vmatprep.subr.mxu0 0.0
    %1349 = vmatpush1.msra.mxu0 0.0
    %1350 = vmatprep.subr.mxu0 0.0
    %1351 = vmatpush1.msra.mxu0 0.0
    %1352 = vmatprep.subr.mxu0 0.0
    %1353 = vmatpush1.msra.mxu0 0.0
    %1354 = vmatprep.subr.mxu0 0.0
    %1355 = vmatpush1.msra.mxu0 0.0
    %1356 = vmatprep.subr.mxu0 0.0
    %1357 = vmatpush1.msra.mxu0 0.0
    %1358 = vmatprep.subr.mxu0 0.0
    %1359 = vmatpush1.msra.mxu0 0.0
    %1360 = vmatprep.subr.mxu0 0.0
    %1361 = vmatpush1.msra.mxu0 0.0
    %1362 = vmatprep.subr.mxu0 0.0
    %1363 = vmatpush1.msra.mxu0 0.0
    %1364 = vmatprep.subr.mxu0 0.0
    %1365 = vmatpush1.msra.mxu0 0.0
    %1366 = vmatprep.subr.mxu0 0.0
    %1367 = vmatpush1.msra.mxu0 %v1331
    %1368 = vmatprep.subr.mxu0 0.0
    %1369 = vmatpush2.msra.mxu0 0.0
    %1370 = vmatprep.subr.mxu0 0.0
    %1371 = vmatpush2.msra.mxu0 0.0
    %1372 = vmatprep.subr.mxu0 0.0
    %1373 = vmatpush2.msra.mxu0 0.0
    %1374 = vmatprep.subr.mxu0 0.0
    %1375 = vmatpush2.msra.mxu0 0.0
    %1376 = vmatprep.subr.mxu0 0.0
    %1377 = vmatpush2.msra.mxu0 0.0
    %1378 = vmatprep.subr.mxu0 0.0
    %1379 = vmatpush2.msra.mxu0 0.0
    %1380 = vmatprep.subr.mxu0 0.0
    %1381 = vmatpush2.msra.mxu0 0.0
    %1382 = vmatprep.subr.mxu0 0.0
    %1383 = vmatpush2.msra.mxu0 0.0
    %1384 = vmatprep.subr.mxu0 0.0
    %1385 = vmatpush2.msra.mxu0 0.0
    %1386 = vmatprep.subr.mxu0 0.0
    %1387 = vmatpush2.msra.mxu0 0.0
    %1388 = vmatprep.subr.mxu0 0.0
    %1389 = vmatpush2.msra.mxu0 0.0
    %1390 = vmatprep.subr.mxu0 0.0
    %1391 = vmatpush2.msra.mxu0 0.0
    %1392 = vmatprep.subr.mxu0 0.0
    %1393 = vmatpush2.msra.mxu0 0.0
    %1394 = vmatprep.subr.mxu0 0.0
    %1395 = vmatpush2.msra.mxu0 0.0
    %1396 = vmatprep.subr.mxu0 0.0
    %1397 = vmatpush2.msra.mxu0 0.0
    %1398 = vmatprep.subr.mxu0 0.0
    %1399 = vmatpush2.msra.mxu0 0.0
    %1400 = vmatprep.mubr.f32.mxu0 0.0
    %1401 = vmatmul.mubr.f32.gmra.mxu0 %v1334
    %v1402 = vpop.f32.mrf.mxu0
    %v1403 = vadd.f32 0.0, %v1402
    %v1404 = vpop.f32.mrf.mxu0
    %1405 = vdwg.mxu0
    %1406 = vrot.lane.b32.xlu0 %v168, 64
    %v1407 = vpop.permute.xlu0 %1406
    %v1410 = vsel %vm171, %v873, 0
    %1412 = vmatprep.subr.mxu0 0.0
    %1413 = vmatpush1.msra.mxu0 0.0
    %1414 = vmatprep.subr.mxu0 0.0
    %1415 = vmatpush1.msra.mxu0 0.0
    %1416 = vmatprep.subr.mxu0 0.0
    %1417 = vmatpush1.msra.mxu0 0.0
    %1418 = vmatprep.subr.mxu0 0.0
    %1419 = vmatpush1.msra.mxu0 0.0
    %1420 = vmatprep.subr.mxu0 0.0
    %1421 = vmatpush1.msra.mxu0 0.0
    %1422 = vmatprep.subr.mxu0 0.0
    %1423 = vmatpush1.msra.mxu0 0.0
    %1424 = vmatprep.subr.mxu0 0.0
    %1425 = vmatpush1.msra.mxu0 0.0
    %1426 = vmatprep.subr.mxu0 0.0
    %1427 = vmatpush1.msra.mxu0 0.0
    %1428 = vmatprep.subr.mxu0 0.0
    %1429 = vmatpush1.msra.mxu0 0.0
    %1430 = vmatprep.subr.mxu0 0.0
    %1431 = vmatpush1.msra.mxu0 0.0
    %1432 = vmatprep.subr.mxu0 0.0
    %1433 = vmatpush1.msra.mxu0 0.0
    %1434 = vmatprep.subr.mxu0 0.0
    %1435 = vmatpush1.msra.mxu0 0.0
    %1436 = vmatprep.subr.mxu0 0.0
    %1437 = vmatpush1.msra.mxu0 0.0
    %1438 = vmatprep.subr.mxu0 0.0
    %1439 = vmatpush1.msra.mxu0 0.0
    %1440 = vmatprep.subr.mxu0 0.0
    %1441 = vmatpush1.msra.mxu0 0.0
    %1442 = vmatprep.subr.mxu0 0.0
    %1443 = vmatpush1.msra.mxu0 %v1407
    %1444 = vmatprep.subr.mxu0 0.0
    %1445 = vmatpush2.msra.mxu0 0.0
    %1446 = vmatprep.subr.mxu0 0.0
    %1447 = vmatpush2.msra.mxu0 0.0
    %1448 = vmatprep.subr.mxu0 0.0
    %1449 = vmatpush2.msra.mxu0 0.0
    %1450 = vmatprep.subr.mxu0 0.0
    %1451 = vmatpush2.msra.mxu0 0.0
    %1452 = vmatprep.subr.mxu0 0.0
    %1453 = vmatpush2.msra.mxu0 0.0
    %1454 = vmatprep.subr.mxu0 0.0
    %1455 = vmatpush2.msra.mxu0 0.0
    %1456 = vmatprep.subr.mxu0 0.0
    %1457 = vmatpush2.msra.mxu0 0.0
    %1458 = vmatprep.subr.mxu0 0.0
    %1459 = vmatpush2.msra.mxu0 0.0
    %1460 = vmatprep.subr.mxu0 0.0
    %1461 = vmatpush2.msra.mxu0 0.0
    %1462 = vmatprep.subr.mxu0 0.0
    %1463 = vmatpush2.msra.mxu0 0.0
    %1464 = vmatprep.subr.mxu0 0.0
    %1465 = vmatpush2.msra.mxu0 0.0
    %1466 = vmatprep.subr.mxu0 0.0
    %1467 = vmatpush2.msra.mxu0 0.0
    %1468 = vmatprep.subr.mxu0 0.0
    %1469 = vmatpush2.msra.mxu0 0.0
    %1470 = vmatprep.subr.mxu0 0.0
    %1471 = vmatpush2.msra.mxu0 0.0
    %1472 = vmatprep.subr.mxu0 0.0
    %1473 = vmatpush2.msra.mxu0 0.0
    %1474 = vmatprep.subr.mxu0 0.0
    %1475 = vmatpush2.msra.mxu0 0.0
    %1476 = vmatprep.mubr.f32.mxu0 0.0
    %1477 = vmatmul.mubr.f32.gmra.mxu0 %v1410
    %v1478 = vpop.f32.mrf.mxu0
    %v1479 = vadd.f32 0.0, %v1478
    %v1480 = vpop.f32.mrf.mxu0
    %1481 = vdwg.mxu0
    %1484 = vrot.lane.b32.xlu0 %v1099, 8
    %v1485 = vpop.permute.xlu0 %1484
    %1486 = vrot.lane.b32.xlu0 %v1175, 8
    %v1487 = vpop.permute.xlu0 %1486
    %1492 = vrot.lane.b32.xlu0 %v1251, 16
    %v1493 = vpop.permute.xlu0 %1492
    %1494 = vrot.lane.b32.xlu0 %v1327, 16
    %v1495 = vpop.permute.xlu0 %1494
    %1500 = vrot.lane.b32.xlu0 %v1403, 24
    %v1501 = vpop.permute.xlu0 %1500
    %1502 = vrot.lane.b32.xlu0 %v1479, 24
    %v1503 = vpop.permute.xlu0 %1502
    %v1506 = vsel %vm171, %v947, %v1485
    %v1507 = vsel %vm171, %v1023, %v1487
    %vm1508 = vcmask 130048
    %v1509 = vsel %vm1508, %v1506, %v1493
    %v1510 = vsel %vm1508, %v1507, %v1495
    %vm1511 = vcmask 195584
    %v1512 = vsel %vm1511, %v1509, %v1501
    %v1513 = vsel %vm1511, %v1510, %v1503
    %v1514 = vlaneseq
    %v1515 = vshrl.u32 %v1514, 7
    %v1516 = vsub.s32 1, %v1515
    %v1517 = vrot.slane %v68, %v1516
    %1522 = vrot.lane.b32.xlu0 %v56, 32
    %v1523 = vpop.permute.xlu0 %1522
    %1524 = vrot.lane.b32.xlu0 %v58, 32
    %v1525 = vpop.permute.xlu0 %1524
    %1526 = vrot.lane.b32.xlu0 %v60, 32
    %v1527 = vpop.permute.xlu0 %1526
    %1528 = vrot.lane.b32.xlu0 %v62, 32
    %v1529 = vpop.permute.xlu0 %1528
    %v1535 = vsel %vm73, %v1512, 0
    %v1538 = vsel %vm73, %v1513, 0
    %1540 = vmatprep.subr.mxu0 0.0
    %1541 = vmatpush1.msra.mxu0 0.0
    %1542 = vmatprep.subr.mxu0 0.0
    %1543 = vmatpush1.msra.mxu0 0.0
    %1544 = vmatprep.subr.mxu0 0.0
    %1545 = vmatpush1.msra.mxu0 0.0
    %1546 = vmatprep.subr.mxu0 0.0
    %1547 = vmatpush1.msra.mxu0 0.0
    %1548 = vmatprep.subr.mxu0 0.0
    %1549 = vmatpush1.msra.mxu0 0.0
    %1550 = vmatprep.subr.mxu0 0.0
    %1551 = vmatpush1.msra.mxu0 0.0
    %1552 = vmatprep.subr.mxu0 0.0
    %1553 = vmatpush1.msra.mxu0 0.0
    %1554 = vmatprep.subr.mxu0 0.0
    %1555 = vmatpush1.msra.mxu0 0.0
    %1556 = vmatprep.subr.mxu0 0.0
    %1557 = vmatpush1.msra.mxu0 0.0
    %1558 = vmatprep.subr.mxu0 0.0
    %1559 = vmatpush1.msra.mxu0 0.0
    %1560 = vmatprep.subr.mxu0 0.0
    %1561 = vmatpush1.msra.mxu0 0.0
    %1562 = vmatprep.subr.mxu0 0.0
    %1563 = vmatpush1.msra.mxu0 0.0
    %1564 = vmatprep.subr.mxu0 0.0
    %1565 = vmatpush1.msra.mxu0 %v1529
    %1566 = vmatprep.subr.mxu0 0.0
    %1567 = vmatpush1.msra.mxu0 %v1527
    %1568 = vmatprep.subr.mxu0 0.0
    %1569 = vmatpush1.msra.mxu0 %v1525
    %1570 = vmatprep.subr.mxu0 0.0
    %1571 = vmatpush1.msra.mxu0 %v1523
    %1572 = vmatprep.subr.mxu0 0.0
    %1573 = vmatpush2.msra.mxu0 0.0
    %1574 = vmatprep.subr.mxu0 0.0
    %1575 = vmatpush2.msra.mxu0 0.0
    %1576 = vmatprep.subr.mxu0 0.0
    %1577 = vmatpush2.msra.mxu0 0.0
    %1578 = vmatprep.subr.mxu0 0.0
    %1579 = vmatpush2.msra.mxu0 0.0
    %1580 = vmatprep.subr.mxu0 0.0
    %1581 = vmatpush2.msra.mxu0 0.0
    %1582 = vmatprep.subr.mxu0 0.0
    %1583 = vmatpush2.msra.mxu0 0.0
    %1584 = vmatprep.subr.mxu0 0.0
    %1585 = vmatpush2.msra.mxu0 0.0
    %1586 = vmatprep.subr.mxu0 0.0
    %1587 = vmatpush2.msra.mxu0 0.0
    %1588 = vmatprep.subr.mxu0 0.0
    %1589 = vmatpush2.msra.mxu0 0.0
    %1590 = vmatprep.subr.mxu0 0.0
    %1591 = vmatpush2.msra.mxu0 0.0
    %1592 = vmatprep.subr.mxu0 0.0
    %1593 = vmatpush2.msra.mxu0 0.0
    %1594 = vmatprep.subr.mxu0 0.0
    %1595 = vmatpush2.msra.mxu0 0.0
    %1596 = vmatprep.subr.mxu0 0.0
    %1597 = vmatpush2.msra.mxu0 0.0
    %1598 = vmatprep.subr.mxu0 0.0
    %1599 = vmatpush2.msra.mxu0 0.0
    %1600 = vmatprep.subr.mxu0 0.0
    %1601 = vmatpush2.msra.mxu0 0.0
    %1602 = vmatprep.subr.mxu0 0.0
    %1603 = vmatpush2.msra.mxu0 0.0
    %1604 = vmatprep.mubr.f32.mxu0 0.0
    %1605 = vmatmul.mubr.f32.gmra.mxu0 %v1535
    %v1606 = vpop.f32.mrf.mxu0
    %v1607 = vadd.f32 %v1517, %v1606
    %v1608 = vpop.f32.mrf.mxu0
    %1609 = vmatprep.mubr.f32.mxu0 0.0
    %1610 = vmatmul.mubr.f32.gmra.mxu0 %v1538
    %v1611 = vpop.f32.mrf.mxu0
    %v1612 = vadd.f32 %v1517, %v1611
    %v1613 = vpop.f32.mrf.mxu0
    %1614 = vdwg.mxu0
    %v1615 = vadd.f32 %v54, %v1607
    %v1616 = vadd.f32 %v55, %v1612
    %v1617 = vsel %vm73, %v1615, 0.0
    %1618 = vadd.xlane.f32.xlu0 %v1617
    %v1619 = vpop.xlane.xlu0 %1618
    %v1620 = vsel %vm73, %v1616, 0.0
    %1621 = vadd.xlane.f32.xlu0 %v1620
    %v1622 = vpop.xlane.xlu0 %1621
    %v1623 = vrcp.pop 32.0
    %v1624 = vmul.f32 %v1619, %v1623
    %v1625 = vmul.f32 %v1622, %v1623
    %v1626 = vsub.f32 %v1615, %v1624
    %v1627 = vsub.f32 %v1616, %v1625
    %v1628 = vmul.f32 %v1626, %v1626
    %v1629 = vmul.f32 %v1627, %v1627
    %v1630 = vsel %vm73, %v1628, 0.0
    %1631 = vadd.xlane.f32.xlu0 %v1630
    %v1632 = vpop.xlane.xlu0 %1631
    %v1633 = vsel %vm73, %v1629, 0.0
    %1634 = vadd.xlane.f32.xlu0 %v1633
    %v1635 = vpop.xlane.xlu0 %1634
    %v1636 = vmul.f32 %v1632, %v1623
    %v1637 = vmul.f32 %v1635, %v1623
    %v1638 = vadd.f32 %v1636, 1e-05
    %v1639 = vadd.f32 %v1637, 1e-05
    %v1640 = vrsqrt.pop %v1638
    %v1641 = vrsqrt.pop %v1639
    %v1642 = vmul.f32 %v1626, %v1640
    %v1643 = vmul.f32 %v1627, %v1641
    %v1644 = vlaneseq
    %v1645 = vshrl.u32 %v1644, 7
    %v1646 = vsub.s32 2, %v1645
    %v1647 = vrot.slane %v68, %v1646
    %v1648 = vmul.f32 %v1642, %v1647
    %v1649 = vmul.f32 %v1643, %v1647
    %v1650 = vlaneseq
    %v1651 = vshrl.u32 %v1650, 7
    %v1652 = vsub.s32 3, %v1651
    %v1653 = vrot.slane %v68, %v1652
    %v1654 = vadd.f32 %v1648, %v1653
    %v1655 = vadd.f32 %v1649, %v1653
    %v1656 = vlaneseq
    %v1657 = vshrl.u32 %v1656, 7
    %v1658 = vsub.s32 4, %v1657
    %v1659 = vrot.slane %v68, %v1658
    %v1661 = vsel %vm73, %v1654, 0
    %v1664 = vsel %vm73, %v1655, 0
    %1666 = vmatprep.subr.mxu0 0.0
    %1667 = vmatpush1.msra.mxu0 0.0
    %1668 = vmatprep.subr.mxu0 0.0
    %1669 = vmatpush1.msra.mxu0 0.0
    %1670 = vmatprep.subr.mxu0 0.0
    %1671 = vmatpush1.msra.mxu0 0.0
    %1672 = vmatprep.subr.mxu0 0.0
    %1673 = vmatpush1.msra.mxu0 0.0
    %1674 = vmatprep.subr.mxu0 0.0
    %1675 = vmatpush1.msra.mxu0 0.0
    %1676 = vmatprep.subr.mxu0 0.0
    %1677 = vmatpush1.msra.mxu0 0.0
    %1678 = vmatprep.subr.mxu0 0.0
    %1679 = vmatpush1.msra.mxu0 0.0
    %1680 = vmatprep.subr.mxu0 0.0
    %1681 = vmatpush1.msra.mxu0 0.0
    %1682 = vmatprep.subr.mxu0 0.0
    %1683 = vmatpush1.msra.mxu0 0.0
    %1684 = vmatprep.subr.mxu0 0.0
    %1685 = vmatpush1.msra.mxu0 0.0
    %1686 = vmatprep.subr.mxu0 0.0
    %1687 = vmatpush1.msra.mxu0 0.0
    %1688 = vmatprep.subr.mxu0 0.0
    %1689 = vmatpush1.msra.mxu0 0.0
    %1690 = vmatprep.subr.mxu0 0.0
    %1691 = vmatpush1.msra.mxu0 %v63
    %1692 = vmatprep.subr.mxu0 0.0
    %1693 = vmatpush1.msra.mxu0 %v61
    %1694 = vmatprep.subr.mxu0 0.0
    %1695 = vmatpush1.msra.mxu0 %v59
    %1696 = vmatprep.subr.mxu0 0.0
    %1697 = vmatpush1.msra.mxu0 %v57
    %1698 = vmatprep.subr.mxu0 0.0
    %1699 = vmatpush2.msra.mxu0 0.0
    %1700 = vmatprep.subr.mxu0 0.0
    %1701 = vmatpush2.msra.mxu0 0.0
    %1702 = vmatprep.subr.mxu0 0.0
    %1703 = vmatpush2.msra.mxu0 0.0
    %1704 = vmatprep.subr.mxu0 0.0
    %1705 = vmatpush2.msra.mxu0 0.0
    %1706 = vmatprep.subr.mxu0 0.0
    %1707 = vmatpush2.msra.mxu0 0.0
    %1708 = vmatprep.subr.mxu0 0.0
    %1709 = vmatpush2.msra.mxu0 0.0
    %1710 = vmatprep.subr.mxu0 0.0
    %1711 = vmatpush2.msra.mxu0 0.0
    %1712 = vmatprep.subr.mxu0 0.0
    %1713 = vmatpush2.msra.mxu0 0.0
    %1714 = vmatprep.subr.mxu0 0.0
    %1715 = vmatpush2.msra.mxu0 0.0
    %1716 = vmatprep.subr.mxu0 0.0
    %1717 = vmatpush2.msra.mxu0 0.0
    %1718 = vmatprep.subr.mxu0 0.0
    %1719 = vmatpush2.msra.mxu0 0.0
    %1720 = vmatprep.subr.mxu0 0.0
    %1721 = vmatpush2.msra.mxu0 0.0
    %1722 = vmatprep.subr.mxu0 0.0
    %1723 = vmatpush2.msra.mxu0 0.0
    %1724 = vmatprep.subr.mxu0 0.0
    %1725 = vmatpush2.msra.mxu0 0.0
    %1726 = vmatprep.subr.mxu0 0.0
    %1727 = vmatpush2.msra.mxu0 0.0
    %1728 = vmatprep.subr.mxu0 0.0
    %1729 = vmatpush2.msra.mxu0 0.0
    %1730 = vmatprep.mubr.f32.mxu0 0.0
    %1731 = vmatmul.mubr.f32.gmra.mxu0 %v1661
    %v1732 = vpop.f32.mrf.mxu0
    %v1733 = vadd.f32 %v1659, %v1732
    %v1734 = vpop.f32.mrf.mxu0
    %1735 = vmatprep.mubr.f32.mxu0 0.0
    %1736 = vmatmul.mubr.f32.gmra.mxu0 %v1664
    %v1737 = vpop.f32.mrf.mxu0
    %v1738 = vadd.f32 %v1659, %v1737
    %v1739 = vpop.f32.mrf.mxu0
    %1740 = vdwg.mxu0
    %v1741 = vmax.f32 %v1733, 0.0
    %v1742 = vmax.f32 %v1738, 0.0
    %v1743 = vlaneseq
    %v1744 = vshrl.u32 %v1743, 7
    %v1745 = vsub.s32 5, %v1744
    %v1746 = vrot.slane %v68, %v1745
    %1755 = vrot.lane.b32.xlu0 %v57, 64
    %v1756 = vpop.permute.xlu0 %1755
    %1757 = vrot.lane.b32.xlu0 %v59, 64
    %v1758 = vpop.permute.xlu0 %1757
    %1759 = vrot.lane.b32.xlu0 %v61, 64
    %v1760 = vpop.permute.xlu0 %1759
    %1761 = vrot.lane.b32.xlu0 %v63, 64
    %v1762 = vpop.permute.xlu0 %1761
    %1763 = vrot.lane.b32.xlu0 %v64, 64
    %v1764 = vpop.permute.xlu0 %1763
    %1765 = vrot.lane.b32.xlu0 %v65, 64
    %v1766 = vpop.permute.xlu0 %1765
    %1767 = vrot.lane.b32.xlu0 %v66, 64
    %v1768 = vpop.permute.xlu0 %1767
    %1769 = vrot.lane.b32.xlu0 %v67, 64
    %v1770 = vpop.permute.xlu0 %1769
    %vm1779 = vcmask 523264
    %v1781 = vsel %vm1779, %v1741, 0
    %v1784 = vsel %vm1779, %v1742, 0
    %1786 = vmatprep.subr.mxu0 0.0
    %1787 = vmatpush1.msra.mxu0 0.0
    %1788 = vmatprep.subr.mxu0 0.0
    %1789 = vmatpush1.msra.mxu0 0.0
    %1790 = vmatprep.subr.mxu0 0.0
    %1791 = vmatpush1.msra.mxu0 0.0
    %1792 = vmatprep.subr.mxu0 0.0
    %1793 = vmatpush1.msra.mxu0 0.0
    %1794 = vmatprep.subr.mxu0 0.0
    %1795 = vmatpush1.msra.mxu0 0.0
    %1796 = vmatprep.subr.mxu0 0.0
    %1797 = vmatpush1.msra.mxu0 0.0
    %1798 = vmatprep.subr.mxu0 0.0
    %1799 = vmatpush1.msra.mxu0 0.0
    %1800 = vmatprep.subr.mxu0 0.0
    %1801 = vmatpush1.msra.mxu0 0.0
    %1802 = vmatprep.subr.mxu0 0.0
    %1803 = vmatpush1.msra.mxu0 %v1770
    %1804 = vmatprep.subr.mxu0 0.0
    %1805 = vmatpush1.msra.mxu0 %v1768
    %1806 = vmatprep.subr.mxu0 0.0
    %1807 = vmatpush1.msra.mxu0 %v1766
    %1808 = vmatprep.subr.mxu0 0.0
    %1809 = vmatpush1.msra.mxu0 %v1764
    %1810 = vmatprep.subr.mxu0 0.0
    %1811 = vmatpush1.msra.mxu0 %v1762
    %1812 = vmatprep.subr.mxu0 0.0
    %1813 = vmatpush1.msra.mxu0 %v1760
    %1814 = vmatprep.subr.mxu0 0.0
    %1815 = vmatpush1.msra.mxu0 %v1758
    %1816 = vmatprep.subr.mxu0 0.0
    %1817 = vmatpush1.msra.mxu0 %v1756
    %1818 = vmatprep.subr.mxu0 0.0
    %1819 = vmatpush2.msra.mxu0 0.0
    %1820 = vmatprep.subr.mxu0 0.0
    %1821 = vmatpush2.msra.mxu0 0.0
    %1822 = vmatprep.subr.mxu0 0.0
    %1823 = vmatpush2.msra.mxu0 0.0
    %1824 = vmatprep.subr.mxu0 0.0
    %1825 = vmatpush2.msra.mxu0 0.0
    %1826 = vmatprep.subr.mxu0 0.0
    %1827 = vmatpush2.msra.mxu0 0.0
    %1828 = vmatprep.subr.mxu0 0.0
    %1829 = vmatpush2.msra.mxu0 0.0
    %1830 = vmatprep.subr.mxu0 0.0
    %1831 = vmatpush2.msra.mxu0 0.0
    %1832 = vmatprep.subr.mxu0 0.0
    %1833 = vmatpush2.msra.mxu0 0.0
    %1834 = vmatprep.subr.mxu0 0.0
    %1835 = vmatpush2.msra.mxu0 0.0
    %1836 = vmatprep.subr.mxu0 0.0
    %1837 = vmatpush2.msra.mxu0 0.0
    %1838 = vmatprep.subr.mxu0 0.0
    %1839 = vmatpush2.msra.mxu0 0.0
    %1840 = vmatprep.subr.mxu0 0.0
    %1841 = vmatpush2.msra.mxu0 0.0
    %1842 = vmatprep.subr.mxu0 0.0
    %1843 = vmatpush2.msra.mxu0 0.0
    %1844 = vmatprep.subr.mxu0 0.0
    %1845 = vmatpush2.msra.mxu0 0.0
    %1846 = vmatprep.subr.mxu0 0.0
    %1847 = vmatpush2.msra.mxu0 0.0
    %1848 = vmatprep.subr.mxu0 0.0
    %1849 = vmatpush2.msra.mxu0 0.0
    %1850 = vmatprep.mubr.f32.mxu0 0.0
    %1851 = vmatmul.mubr.f32.gmra.mxu0 %v1781
    %v1852 = vpop.f32.mrf.mxu0
    %v1853 = vadd.f32 %v1746, %v1852
    %v1854 = vpop.f32.mrf.mxu0
    %1855 = vmatprep.mubr.f32.mxu0 0.0
    %1856 = vmatmul.mubr.f32.gmra.mxu0 %v1784
    %v1857 = vpop.f32.mrf.mxu0
    %v1858 = vadd.f32 %v1746, %v1857
    %v1859 = vpop.f32.mrf.mxu0
    %1860 = vdwg.mxu0
    %v1861 = vadd.f32 %v1654, %v1853
    %v1862 = vadd.f32 %v1655, %v1858
    %v1863 = vsel %vm73, %v1861, 0.0
    %1864 = vadd.xlane.f32.xlu0 %v1863
    %v1865 = vpop.xlane.xlu0 %1864
    %v1866 = vsel %vm73, %v1862, 0.0
    %1867 = vadd.xlane.f32.xlu0 %v1866
    %v1868 = vpop.xlane.xlu0 %1867
    %v1869 = vmul.f32 %v1865, %v1623
    %v1870 = vmul.f32 %v1868, %v1623
    %v1871 = vsub.f32 %v1861, %v1869
    %v1872 = vsub.f32 %v1862, %v1870
    %v1873 = vmul.f32 %v1871, %v1871
    %v1874 = vmul.f32 %v1872, %v1872
    %v1875 = vsel %vm73, %v1873, 0.0
    %1876 = vadd.xlane.f32.xlu0 %v1875
    %v1877 = vpop.xlane.xlu0 %1876
    %v1878 = vsel %vm73, %v1874, 0.0
    %1879 = vadd.xlane.f32.xlu0 %v1878
    %v1880 = vpop.xlane.xlu0 %1879
    %v1881 = vmul.f32 %v1877, %v1623
    %v1882 = vmul.f32 %v1880, %v1623
    %v1883 = vadd.f32 %v1881, 1e-05
    %v1884 = vadd.f32 %v1882, 1e-05
    %v1885 = vrsqrt.pop %v1883
    %v1886 = vrsqrt.pop %v1884
    %v1887 = vmul.f32 %v1871, %v1885
    %v1888 = vmul.f32 %v1872, %v1886
    %v1889 = vlaneseq
    %v1890 = vshrl.u32 %v1889, 7
    %v1891 = vsub.s32 6, %v1890
    %v1892 = vrot.slane %v68, %v1891
    %v1893 = vmul.f32 %v1887, %v1892
    %v1894 = vmul.f32 %v1888, %v1892
    %v1895 = vlaneseq
    %v1896 = vshrl.u32 %v1895, 7
    %v1897 = vsub.s32 7, %v1896
    %v1898 = vrot.slane %v68, %v1897
    %v1899 = vadd.f32 %v1893, %v1898
    %v1900 = vadd.f32 %v1894, %v1898
    %1901 = vst.msk [vmem:[#allocation8] sm:$0xff] %vm73, %v1899
    %1902 = vst.msk [vmem:[#allocation8 + $0x8] sm:$0xff] %vm73, %v1900
    // Predicated region
    $region26: #{tpu_custom_call.1} parent=1 // pred_check
      _
    $region27: #{tpu_custom_call.1} parent=1 // pred_check_branch
      %1904 = sbr.rel (0) target = $region29
    $region28: #{tpu_custom_call.1} parent=1 // pred_region
      %s1906 = ssub.s32 256, 256
      %1907 = vsyncadd [#allocation4], %s1906
      %s1908 = sshll.u32 [#allocation8], 4
      %s1909 = int_to_ptr.vmem [resolvable:$true] %s1908
      %1914 = dma.vmem_to_hbm [thread:$0]  %s1909, 256, %s3, [#allocation4], 128, 128, 8
    $region29: #{tpu_custom_call.1} parent=1 // pred_fallthru
      _
    // Predicated region
    $region30: #{tpu_custom_call.1} parent=1 // pred_check
      _
    $region31: #{tpu_custom_call.1} parent=1 // pred_check_branch
      %1916 = sbr.rel (0) target = $region33
    $region32: #{tpu_custom_call.1} parent=1 // pred_region
      %1917 = dma.done [#allocation4], 256
    $region33: #{tpu_custom_call.1} parent=1 // pred_fallthru
      _
    %1918 = vsyncpa [#allocation3], 1
    %1919 = vsyncpa [#allocation6], 1
    %1920 = vsyncpa [#allocation4], 1

</llo_original>
